<compile_context>
chip_gen: v5e
topology: v5e:2x2
jax: 0.10.0
libtpu: 0.0.40
codegen_flags: <defaults>
</compile_context>

<pallas_src>
import numpy as np
import jax
import jax.numpy as jnp
from jax import lax
from jax.experimental import pallas as pl
from jax.experimental.pallas import tpu as pltpu

EPS = 1e-5          # nn.BatchNorm1d default eps
NEG_SLOPE = 0.01    # nn.LeakyReLU default negative_slope
LANES = 128

# (out, in) of the six nn.Linear layers, in forward order.
DIMS = ((5, 6), (4, 5), (2, 4), (4, 2), (5, 4), (6, 5))
# (linear-layer index, feature count) of the four BatchNorm1d layers.
BN_LAYERS = ((0, 5), (1, 4), (3, 4), (4, 5))


def _build_param_offsets():
    """Static offsets of every scalar parameter inside the flat SMEM vector."""
    off, pos = {}, 0
    for l, (o, i) in enumerate(DIMS):
        off[("w", l)] = pos
        pos += o * i
    off[("b", 2)] = pos; pos += DIMS[2][0]      # encoder bottleneck bias
    off[("b", 5)] = pos; pos += DIMS[5][0]      # final decoder bias
    for l, f in BN_LAYERS:
        off[("g", l)] = pos; pos += f           # BatchNorm gamma
        off[("be", l)] = pos; pos += f          # BatchNorm beta
    return off, pos


PARAM_OFF, PARAM_LEN = _build_param_offsets()   # PARAM_LEN == 160


def _make_kernel(n_real, n_pad):
    """Build the kernel specialized to a (real, padded) batch size."""
    s = n_pad // LANES
    need_mask = n_pad != n_real
    inv_n = np.float32(1.0 / n_real)            # BN divisor = REAL batch size

    def kernel(x_ref, p_ref, out_ref):
        if need_mask:
            row = lax.broadcasted_iota(jnp.int32, (s, LANES), 0)
            col = lax.broadcasted_iota(jnp.int32, (s, LANES), 1)
            valid = ((row * LANES + col) < n_real).astype(jnp.float32)

        def rezero(plane):
            # Keep pad lanes exactly zero so downstream (bias-free) linears and
            # BatchNorm sums only ever see the real batch.
            return plane * valid if need_mask else plane

        def linear(layer, planes):
            # K <= 6: unrolled scalar-weight * dense-plane MACs on the VPU
            # (weights are sreg reads from SMEM that splat onto vregs).
            out_d, in_d = DIMS[layer]
            w0 = PARAM_OFF[("w", layer)]
            outs = []
            for o in range(out_d):
                acc = p_ref[w0 + o * in_d] * planes[0]
                for k in range(1, in_d):
                    acc = acc + p_ref[w0 + o * in_d + k] * planes[k]
                outs.append(acc)
            return outs

        def add_bias(layer, planes):
            b0 = PARAM_OFF[("b", layer)]
            return [rezero(h + p_ref[b0 + f]) for f, h in enumerate(planes)]

        def bn_lrelu(layer, planes):
            # Training-mode BatchNorm1d (batch stats, biased var) folded into one
            # scale/shift, then LeakyReLU.  One pass: sum and sumsq are
            # independent reductions; no centered temporary is materialized.
            g0 = PARAM_OFF[("g", layer)]
            be0 = PARAM_OFF[("be", layer)]
            outs = []
            for f, h in enumerate(planes):
                total = jnp.sum(h, keepdims=True)            # (1, 1)
                total_sq = jnp.sum(h * h, keepdims=True)     # (1, 1)
                mean = total * inv_n
                var = jnp.maximum(total_sq * inv_n - mean * mean, 0.0)
                scale = p_ref[g0 + f] * lax.rsqrt(var + EPS)  # EUP rsqrt
                shift = p_ref[be0 + f] - mean * scale
                y = h * scale + shift
                y = jnp.maximum(y, NEG_SLOPE * y)             # LeakyReLU
                outs.append(rezero(y))
            return outs

        # 6 dense (S, 128) input feature planes.
        x = [x_ref[k] for k in range(DIMS[0][1])]

        # ---- encoder ---- (pre-BN Linear biases dropped: BN cancels them exactly)
        h = bn_lrelu(0, linear(0, x))
        h = bn_lrelu(1, linear(1, h))
        z = add_bias(2, linear(2, h))
        # ---- decoder ----
        h = bn_lrelu(3, linear(3, z))
        h = bn_lrelu(4, linear(4, h))
        out = linear(5, h)
        b0 = PARAM_OFF[("b", 5)]
        for o in range(DIMS[5][0]):
            out_ref[o] = out[o] + p_ref[b0 + o]

    return kernel


def net_forward(x, params):
    """x: (N, 6) float32 in the PyTorch (batch, features) layout. Returns (N, 6)."""
    n, feat = x.shape
    assert feat == DIMS[0][1]
    n_pad = ((n + LANES - 1) // LANES) * LANES   # ideally a multiple of 1024 for fully dense vregs
    s = n_pad // LANES

    # Feature-major, sublane+lane dense blocked layout (6, S, 128).
    # TODO(synk): a feature-major end-to-end pipeline could hand these planes in
    # (and consume the plane output) directly, removing this transpose pair —
    # the dominant cost at small N per the perf review.
    xt = x.T
    if n_pad != n:
        xt = jnp.pad(xt, ((0, 0), (0, n_pad - n)))
    x_planes = xt.reshape(feat, s, LANES)

    # TODO(synk): for N large enough that the grid-less footprint (~60*n_pad bytes
    # of live planes) nears the VMEM budget (64 MiB/TC on v7x), switch to a
    # batch-tiled grid with two-pass (sum, sumsq) BatchNorm accumulation and, on
    # v7x, split the batch across both TensorCores exchanging only per-layer stats.
    out_planes = pl.pallas_call(
        _make_kernel(n, n_pad),
        out_shape=jax.ShapeDtypeStruct((DIMS[5][0], s, LANES), jnp.float32),
        in_specs=[
            pl.BlockSpec(memory_space=pltpu.MemorySpace.VMEM),   # activation planes
            pl.BlockSpec(memory_space=pltpu.MemorySpace.SMEM),   # flat scalar params
        ],
        out_specs=pl.BlockSpec(memory_space=pltpu.MemorySpace.VMEM),
        compiler_params=pltpu.CompilerParams(vmem_limit_bytes=32 * 1024 * 1024),
    )(x_planes, params)

    return out_planes.reshape(DIMS[5][0], n_pad)[:, :n].T


def init_params(key):
    """PyTorch-style init. Returns (flat_params, ws, bs).

    ws/bs are the unpacked per-layer weights (out, in) and biases (out,) used by
    the pure-JAX reference, which keeps ALL biases exactly like the PyTorch module.
    """
    ws, bs = [], []
    for fan_out, fan_in in DIMS:
        key, kw, kb = jax.random.split(key, 3)
        bound = 1.0 / float(np.sqrt(fan_in))
        ws.append(jax.random.uniform(kw, (fan_out, fan_in), jnp.float32, -bound, bound))
        bs.append(jax.random.uniform(kb, (fan_out,), jnp.float32, -bound, bound))

    p = np.zeros((PARAM_LEN,), np.float32)
    for l, (o, i) in enumerate(DIMS):
        w0 = PARAM_OFF[("w", l)]
        p[w0:w0 + o * i] = np.asarray(ws[l]).reshape(-1)
    p[PARAM_OFF[("b", 2)]:PARAM_OFF[("b", 2)] + DIMS[2][0]] = np.asarray(bs[2])
    p[PARAM_OFF[("b", 5)]:PARAM_OFF[("b", 5)] + DIMS[5][0]] = np.asarray(bs[5])
    for l, f in BN_LAYERS:
        p[PARAM_OFF[("g", l)]:PARAM_OFF[("g", l)] + f] = 1.0   # gamma (fresh module)
        # beta stays 0; pre-BN Linear biases (bs[0,1,3,4]) are BN-cancelled and
        # intentionally NOT packed into the kernel parameters.
    return jnp.asarray(p), ws, bs


def reference_forward(x, ws, bs):
    """Pure-JAX mirror of the PyTorch module (training-mode BN, ALL biases kept)."""
    def bn_lrelu(h):
        mean = jnp.mean(h, axis=0, keepdims=True)
        var = jnp.mean((h - mean) ** 2, axis=0, keepdims=True)
        y = (h - mean) * jax.lax.rsqrt(var + EPS)   # gamma=1, beta=0 (fresh module)
        return jnp.where(y > 0, y, NEG_SLOPE * y)

    h = bn_lrelu(x @ ws[0].T + bs[0])
    h = bn_lrelu(h @ ws[1].T + bs[1])
    z = h @ ws[2].T + bs[2]
    h = bn_lrelu(z @ ws[3].T + bs[3])
    h = bn_lrelu(h @ ws[4].T + bs[4])
    return h @ ws[5].T + bs[5]


if __name__ == "__main__":
    key = jax.random.PRNGKey(0)
    kp, k1, k2 = jax.random.split(key, 3)
    params, ws, bs = init_params(kp)

    # N=256: lane-aligned fast path.  N=200: exercises the pad+mask path while
    # keeping the training-mode BatchNorm statistics exact over the real batch.
    for n, kx in ((256, k1), (200, k2)):
        x = jax.random.normal(kx, (n, 6), jnp.float32)
        out = jax.block_until_ready(net_forward(x, params))
        ref = reference_forward(x, ws, bs)
        assert out.shape == (n, 6)
        max_err = float(jnp.max(jnp.abs(out - ref)))
        assert jnp.allclose(out, ref, atol=1e-4, rtol=1e-4), max_err

    print("KERNEL_OK")
</pallas_src>

<mosaic_0001>
module attributes {stable_mosaic.version = 11 : i64} {
  func.func @kernel(%arg0: memref<6x2x128xf32, #tpu.memory_space<vmem>>, %arg1: memref<160xf32, #tpu.memory_space<smem>>, %arg2: memref<6x2x128xf32, #tpu.memory_space<vmem>>) attributes {dimension_semantics = [], scalar_prefetch = 0 : i64, scratch_operands = 0 : i64, tpu.core_type = #tpu.core_type<tc>} {
    %c0 = arith.constant 0 : index
    %c0_0 = arith.constant 0 : index
    %c0_1 = arith.constant 0 : index
    %0 = vector.load %arg0[%c0, %c0_0, %c0_1] : memref<6x2x128xf32, #tpu.memory_space<vmem>>, vector<1x2x128xf32>
    %1 = vector.shape_cast %0 : vector<1x2x128xf32> to vector<2x128xf32>
    %c1 = arith.constant 1 : index
    %c0_2 = arith.constant 0 : index
    %c0_3 = arith.constant 0 : index
    %2 = vector.load %arg0[%c1, %c0_2, %c0_3] : memref<6x2x128xf32, #tpu.memory_space<vmem>>, vector<1x2x128xf32>
    %3 = vector.shape_cast %2 : vector<1x2x128xf32> to vector<2x128xf32>
    %c2 = arith.constant 2 : index
    %c0_4 = arith.constant 0 : index
    %c0_5 = arith.constant 0 : index
    %4 = vector.load %arg0[%c2, %c0_4, %c0_5] : memref<6x2x128xf32, #tpu.memory_space<vmem>>, vector<1x2x128xf32>
    %5 = vector.shape_cast %4 : vector<1x2x128xf32> to vector<2x128xf32>
    %c3 = arith.constant 3 : index
    %c0_6 = arith.constant 0 : index
    %c0_7 = arith.constant 0 : index
    %6 = vector.load %arg0[%c3, %c0_6, %c0_7] : memref<6x2x128xf32, #tpu.memory_space<vmem>>, vector<1x2x128xf32>
    %7 = vector.shape_cast %6 : vector<1x2x128xf32> to vector<2x128xf32>
    %c4 = arith.constant 4 : index
    %c0_8 = arith.constant 0 : index
    %c0_9 = arith.constant 0 : index
    %8 = vector.load %arg0[%c4, %c0_8, %c0_9] : memref<6x2x128xf32, #tpu.memory_space<vmem>>, vector<1x2x128xf32>
    %9 = vector.shape_cast %8 : vector<1x2x128xf32> to vector<2x128xf32>
    %c5 = arith.constant 5 : index
    %c0_10 = arith.constant 0 : index
    %c0_11 = arith.constant 0 : index
    %10 = vector.load %arg0[%c5, %c0_10, %c0_11] : memref<6x2x128xf32, #tpu.memory_space<vmem>>, vector<1x2x128xf32>
    %11 = vector.shape_cast %10 : vector<1x2x128xf32> to vector<2x128xf32>
    %c0_12 = arith.constant 0 : index
    %12 = memref.load %arg1[%c0_12] : memref<160xf32, #tpu.memory_space<smem>>
    %13 = vector.broadcast %12 : f32 to vector<2x128xf32>
    %14 = arith.mulf %13, %1 : vector<2x128xf32>
    %c1_13 = arith.constant 1 : index
    %15 = memref.load %arg1[%c1_13] : memref<160xf32, #tpu.memory_space<smem>>
    %16 = vector.broadcast %15 : f32 to vector<2x128xf32>
    %17 = arith.mulf %16, %3 : vector<2x128xf32>
    %18 = arith.addf %14, %17 : vector<2x128xf32>
    %c2_14 = arith.constant 2 : index
    %19 = memref.load %arg1[%c2_14] : memref<160xf32, #tpu.memory_space<smem>>
    %20 = vector.broadcast %19 : f32 to vector<2x128xf32>
    %21 = arith.mulf %20, %5 : vector<2x128xf32>
    %22 = arith.addf %18, %21 : vector<2x128xf32>
    %c3_15 = arith.constant 3 : index
    %23 = memref.load %arg1[%c3_15] : memref<160xf32, #tpu.memory_space<smem>>
    %24 = vector.broadcast %23 : f32 to vector<2x128xf32>
    %25 = arith.mulf %24, %7 : vector<2x128xf32>
    %26 = arith.addf %22, %25 : vector<2x128xf32>
    %c4_16 = arith.constant 4 : index
    %27 = memref.load %arg1[%c4_16] : memref<160xf32, #tpu.memory_space<smem>>
    %28 = vector.broadcast %27 : f32 to vector<2x128xf32>
    %29 = arith.mulf %28, %9 : vector<2x128xf32>
    %30 = arith.addf %26, %29 : vector<2x128xf32>
    %c5_17 = arith.constant 5 : index
    %31 = memref.load %arg1[%c5_17] : memref<160xf32, #tpu.memory_space<smem>>
    %32 = vector.broadcast %31 : f32 to vector<2x128xf32>
    %33 = arith.mulf %32, %11 : vector<2x128xf32>
    %34 = arith.addf %30, %33 : vector<2x128xf32>
    %c6 = arith.constant 6 : index
    %35 = memref.load %arg1[%c6] : memref<160xf32, #tpu.memory_space<smem>>
    %36 = vector.broadcast %35 : f32 to vector<2x128xf32>
    %37 = arith.mulf %36, %1 : vector<2x128xf32>
    %c7 = arith.constant 7 : index
    %38 = memref.load %arg1[%c7] : memref<160xf32, #tpu.memory_space<smem>>
    %39 = vector.broadcast %38 : f32 to vector<2x128xf32>
    %40 = arith.mulf %39, %3 : vector<2x128xf32>
    %41 = arith.addf %37, %40 : vector<2x128xf32>
    %c8 = arith.constant 8 : index
    %42 = memref.load %arg1[%c8] : memref<160xf32, #tpu.memory_space<smem>>
    %43 = vector.broadcast %42 : f32 to vector<2x128xf32>
    %44 = arith.mulf %43, %5 : vector<2x128xf32>
    %45 = arith.addf %41, %44 : vector<2x128xf32>
    %c9 = arith.constant 9 : index
    %46 = memref.load %arg1[%c9] : memref<160xf32, #tpu.memory_space<smem>>
    %47 = vector.broadcast %46 : f32 to vector<2x128xf32>
    %48 = arith.mulf %47, %7 : vector<2x128xf32>
    %49 = arith.addf %45, %48 : vector<2x128xf32>
    %c10 = arith.constant 10 : index
    %50 = memref.load %arg1[%c10] : memref<160xf32, #tpu.memory_space<smem>>
    %51 = vector.broadcast %50 : f32 to vector<2x128xf32>
    %52 = arith.mulf %51, %9 : vector<2x128xf32>
    %53 = arith.addf %49, %52 : vector<2x128xf32>
    %c11 = arith.constant 11 : index
    %54 = memref.load %arg1[%c11] : memref<160xf32, #tpu.memory_space<smem>>
    %55 = vector.broadcast %54 : f32 to vector<2x128xf32>
    %56 = arith.mulf %55, %11 : vector<2x128xf32>
    %57 = arith.addf %53, %56 : vector<2x128xf32>
    %c12 = arith.constant 12 : index
    %58 = memref.load %arg1[%c12] : memref<160xf32, #tpu.memory_space<smem>>
    %59 = vector.broadcast %58 : f32 to vector<2x128xf32>
    %60 = arith.mulf %59, %1 : vector<2x128xf32>
    %c13 = arith.constant 13 : index
    %61 = memref.load %arg1[%c13] : memref<160xf32, #tpu.memory_space<smem>>
    %62 = vector.broadcast %61 : f32 to vector<2x128xf32>
    %63 = arith.mulf %62, %3 : vector<2x128xf32>
    %64 = arith.addf %60, %63 : vector<2x128xf32>
    %c14 = arith.constant 14 : index
    %65 = memref.load %arg1[%c14] : memref<160xf32, #tpu.memory_space<smem>>
    %66 = vector.broadcast %65 : f32 to vector<2x128xf32>
    %67 = arith.mulf %66, %5 : vector<2x128xf32>
    %68 = arith.addf %64, %67 : vector<2x128xf32>
    %c15 = arith.constant 15 : index
    %69 = memref.load %arg1[%c15] : memref<160xf32, #tpu.memory_space<smem>>
    %70 = vector.broadcast %69 : f32 to vector<2x128xf32>
    %71 = arith.mulf %70, %7 : vector<2x128xf32>
    %72 = arith.addf %68, %71 : vector<2x128xf32>
    %c16 = arith.constant 16 : index
    %73 = memref.load %arg1[%c16] : memref<160xf32, #tpu.memory_space<smem>>
    %74 = vector.broadcast %73 : f32 to vector<2x128xf32>
    %75 = arith.mulf %74, %9 : vector<2x128xf32>
    %76 = arith.addf %72, %75 : vector<2x128xf32>
    %c17 = arith.constant 17 : index
    %77 = memref.load %arg1[%c17] : memref<160xf32, #tpu.memory_space<smem>>
    %78 = vector.broadcast %77 : f32 to vector<2x128xf32>
    %79 = arith.mulf %78, %11 : vector<2x128xf32>
    %80 = arith.addf %76, %79 : vector<2x128xf32>
    %c18 = arith.constant 18 : index
    %81 = memref.load %arg1[%c18] : memref<160xf32, #tpu.memory_space<smem>>
    %82 = vector.broadcast %81 : f32 to vector<2x128xf32>
    %83 = arith.mulf %82, %1 : vector<2x128xf32>
    %c19 = arith.constant 19 : index
    %84 = memref.load %arg1[%c19] : memref<160xf32, #tpu.memory_space<smem>>
    %85 = vector.broadcast %84 : f32 to vector<2x128xf32>
    %86 = arith.mulf %85, %3 : vector<2x128xf32>
    %87 = arith.addf %83, %86 : vector<2x128xf32>
    %c20 = arith.constant 20 : index
    %88 = memref.load %arg1[%c20] : memref<160xf32, #tpu.memory_space<smem>>
    %89 = vector.broadcast %88 : f32 to vector<2x128xf32>
    %90 = arith.mulf %89, %5 : vector<2x128xf32>
    %91 = arith.addf %87, %90 : vector<2x128xf32>
    %c21 = arith.constant 21 : index
    %92 = memref.load %arg1[%c21] : memref<160xf32, #tpu.memory_space<smem>>
    %93 = vector.broadcast %92 : f32 to vector<2x128xf32>
    %94 = arith.mulf %93, %7 : vector<2x128xf32>
    %95 = arith.addf %91, %94 : vector<2x128xf32>
    %c22 = arith.constant 22 : index
    %96 = memref.load %arg1[%c22] : memref<160xf32, #tpu.memory_space<smem>>
    %97 = vector.broadcast %96 : f32 to vector<2x128xf32>
    %98 = arith.mulf %97, %9 : vector<2x128xf32>
    %99 = arith.addf %95, %98 : vector<2x128xf32>
    %c23 = arith.constant 23 : index
    %100 = memref.load %arg1[%c23] : memref<160xf32, #tpu.memory_space<smem>>
    %101 = vector.broadcast %100 : f32 to vector<2x128xf32>
    %102 = arith.mulf %101, %11 : vector<2x128xf32>
    %103 = arith.addf %99, %102 : vector<2x128xf32>
    %c24 = arith.constant 24 : index
    %104 = memref.load %arg1[%c24] : memref<160xf32, #tpu.memory_space<smem>>
    %105 = vector.broadcast %104 : f32 to vector<2x128xf32>
    %106 = arith.mulf %105, %1 : vector<2x128xf32>
    %c25 = arith.constant 25 : index
    %107 = memref.load %arg1[%c25] : memref<160xf32, #tpu.memory_space<smem>>
    %108 = vector.broadcast %107 : f32 to vector<2x128xf32>
    %109 = arith.mulf %108, %3 : vector<2x128xf32>
    %110 = arith.addf %106, %109 : vector<2x128xf32>
    %c26 = arith.constant 26 : index
    %111 = memref.load %arg1[%c26] : memref<160xf32, #tpu.memory_space<smem>>
    %112 = vector.broadcast %111 : f32 to vector<2x128xf32>
    %113 = arith.mulf %112, %5 : vector<2x128xf32>
    %114 = arith.addf %110, %113 : vector<2x128xf32>
    %c27 = arith.constant 27 : index
    %115 = memref.load %arg1[%c27] : memref<160xf32, #tpu.memory_space<smem>>
    %116 = vector.broadcast %115 : f32 to vector<2x128xf32>
    %117 = arith.mulf %116, %7 : vector<2x128xf32>
    %118 = arith.addf %114, %117 : vector<2x128xf32>
    %c28 = arith.constant 28 : index
    %119 = memref.load %arg1[%c28] : memref<160xf32, #tpu.memory_space<smem>>
    %120 = vector.broadcast %119 : f32 to vector<2x128xf32>
    %121 = arith.mulf %120, %9 : vector<2x128xf32>
    %122 = arith.addf %118, %121 : vector<2x128xf32>
    %c29 = arith.constant 29 : index
    %123 = memref.load %arg1[%c29] : memref<160xf32, #tpu.memory_space<smem>>
    %124 = vector.broadcast %123 : f32 to vector<2x128xf32>
    %125 = arith.mulf %124, %11 : vector<2x128xf32>
    %126 = arith.addf %122, %125 : vector<2x128xf32>
    %127 = vector.shape_cast %34 : vector<2x128xf32> to vector<1x2x128xf32>
    %cst = arith.constant dense<0.000000e+00> : vector<1xf32>
    %128 = vector.multi_reduction <add>, %127, %cst [1, 2] : vector<1x2x128xf32> to vector<1xf32>
    %129 = vector.shape_cast %128 : vector<1xf32> to vector<1x1x1xf32>
    %130 = vector.extract %129[0, 0, 0] : f32 from vector<1x1x1xf32>
    %131 = vector.broadcast %130 : f32 to vector<1x1xf32>
    %132 = arith.mulf %34, %34 : vector<2x128xf32>
    %133 = vector.shape_cast %132 : vector<2x128xf32> to vector<1x2x128xf32>
    %cst_18 = arith.constant dense<0.000000e+00> : vector<1xf32>
    %134 = vector.multi_reduction <add>, %133, %cst_18 [1, 2] : vector<1x2x128xf32> to vector<1xf32>
    %135 = vector.shape_cast %134 : vector<1xf32> to vector<1x1x1xf32>
    %136 = vector.extract %135[0, 0, 0] : f32 from vector<1x1x1xf32>
    %137 = vector.broadcast %136 : f32 to vector<1x1xf32>
    %cst_19 = arith.constant 3.906250e-03 : f32
    %138 = vector.broadcast %cst_19 : f32 to vector<1x1xf32>
    %139 = arith.mulf %131, %138 : vector<1x1xf32>
    %cst_20 = arith.constant 3.906250e-03 : f32
    %140 = vector.broadcast %cst_20 : f32 to vector<1x1xf32>
    %141 = arith.mulf %137, %140 : vector<1x1xf32>
    %142 = arith.mulf %139, %139 : vector<1x1xf32>
    %143 = arith.subf %141, %142 : vector<1x1xf32>
    %cst_21 = arith.constant 0.000000e+00 : f32
    %144 = vector.broadcast %cst_21 : f32 to vector<1x1xf32>
    %145 = arith.maximumf %143, %144 : vector<1x1xf32>
    %c124 = arith.constant 124 : index
    %146 = memref.load %arg1[%c124] : memref<160xf32, #tpu.memory_space<smem>>
    %cst_22 = arith.constant 9.99999974E-6 : f32
    %147 = vector.broadcast %cst_22 : f32 to vector<1x1xf32>
    %148 = arith.addf %145, %147 : vector<1x1xf32>
    %149 = math.rsqrt %148 : vector<1x1xf32>
    %150 = vector.broadcast %146 : f32 to vector<1x1xf32>
    %151 = arith.mulf %150, %149 : vector<1x1xf32>
    %c129 = arith.constant 129 : index
    %152 = memref.load %arg1[%c129] : memref<160xf32, #tpu.memory_space<smem>>
    %153 = arith.mulf %139, %151 : vector<1x1xf32>
    %154 = vector.broadcast %152 : f32 to vector<1x1xf32>
    %155 = arith.subf %154, %153 : vector<1x1xf32>
    %156 = vector.broadcast %151 : vector<1x1xf32> to vector<2x128xf32>
    %157 = arith.mulf %34, %156 : vector<2x128xf32>
    %158 = vector.broadcast %155 : vector<1x1xf32> to vector<2x128xf32>
    %159 = arith.addf %157, %158 : vector<2x128xf32>
    %cst_23 = arith.constant 0.00999999977 : f32
    %160 = vector.broadcast %cst_23 : f32 to vector<2x128xf32>
    %161 = arith.mulf %160, %159 : vector<2x128xf32>
    %162 = arith.maximumf %159, %161 : vector<2x128xf32>
    %163 = vector.shape_cast %57 : vector<2x128xf32> to vector<1x2x128xf32>
    %cst_24 = arith.constant dense<0.000000e+00> : vector<1xf32>
    %164 = vector.multi_reduction <add>, %163, %cst_24 [1, 2] : vector<1x2x128xf32> to vector<1xf32>
    %165 = vector.shape_cast %164 : vector<1xf32> to vector<1x1x1xf32>
    %166 = vector.extract %165[0, 0, 0] : f32 from vector<1x1x1xf32>
    %167 = vector.broadcast %166 : f32 to vector<1x1xf32>
    %168 = arith.mulf %57, %57 : vector<2x128xf32>
    %169 = vector.shape_cast %168 : vector<2x128xf32> to vector<1x2x128xf32>
    %cst_25 = arith.constant dense<0.000000e+00> : vector<1xf32>
    %170 = vector.multi_reduction <add>, %169, %cst_25 [1, 2] : vector<1x2x128xf32> to vector<1xf32>
    %171 = vector.shape_cast %170 : vector<1xf32> to vector<1x1x1xf32>
    %172 = vector.extract %171[0, 0, 0] : f32 from vector<1x1x1xf32>
    %173 = vector.broadcast %172 : f32 to vector<1x1xf32>
    %cst_26 = arith.constant 3.906250e-03 : f32
    %174 = vector.broadcast %cst_26 : f32 to vector<1x1xf32>
    %175 = arith.mulf %167, %174 : vector<1x1xf32>
    %cst_27 = arith.constant 3.906250e-03 : f32
    %176 = vector.broadcast %cst_27 : f32 to vector<1x1xf32>
    %177 = arith.mulf %173, %176 : vector<1x1xf32>
    %178 = arith.mulf %175, %175 : vector<1x1xf32>
    %179 = arith.subf %177, %178 : vector<1x1xf32>
    %cst_28 = arith.constant 0.000000e+00 : f32
    %180 = vector.broadcast %cst_28 : f32 to vector<1x1xf32>
    %181 = arith.maximumf %179, %180 : vector<1x1xf32>
    %c125 = arith.constant 125 : index
    %182 = memref.load %arg1[%c125] : memref<160xf32, #tpu.memory_space<smem>>
    %cst_29 = arith.constant 9.99999974E-6 : f32
    %183 = vector.broadcast %cst_29 : f32 to vector<1x1xf32>
    %184 = arith.addf %181, %183 : vector<1x1xf32>
    %185 = math.rsqrt %184 : vector<1x1xf32>
    %186 = vector.broadcast %182 : f32 to vector<1x1xf32>
    %187 = arith.mulf %186, %185 : vector<1x1xf32>
    %c130 = arith.constant 130 : index
    %188 = memref.load %arg1[%c130] : memref<160xf32, #tpu.memory_space<smem>>
    %189 = arith.mulf %175, %187 : vector<1x1xf32>
    %190 = vector.broadcast %188 : f32 to vector<1x1xf32>
    %191 = arith.subf %190, %189 : vector<1x1xf32>
    %192 = vector.broadcast %187 : vector<1x1xf32> to vector<2x128xf32>
    %193 = arith.mulf %57, %192 : vector<2x128xf32>
    %194 = vector.broadcast %191 : vector<1x1xf32> to vector<2x128xf32>
    %195 = arith.addf %193, %194 : vector<2x128xf32>
    %cst_30 = arith.constant 0.00999999977 : f32
    %196 = vector.broadcast %cst_30 : f32 to vector<2x128xf32>
    %197 = arith.mulf %196, %195 : vector<2x128xf32>
    %198 = arith.maximumf %195, %197 : vector<2x128xf32>
    %199 = vector.shape_cast %80 : vector<2x128xf32> to vector<1x2x128xf32>
    %cst_31 = arith.constant dense<0.000000e+00> : vector<1xf32>
    %200 = vector.multi_reduction <add>, %199, %cst_31 [1, 2] : vector<1x2x128xf32> to vector<1xf32>
    %201 = vector.shape_cast %200 : vector<1xf32> to vector<1x1x1xf32>
    %202 = vector.extract %201[0, 0, 0] : f32 from vector<1x1x1xf32>
    %203 = vector.broadcast %202 : f32 to vector<1x1xf32>
    %204 = arith.mulf %80, %80 : vector<2x128xf32>
    %205 = vector.shape_cast %204 : vector<2x128xf32> to vector<1x2x128xf32>
    %cst_32 = arith.constant dense<0.000000e+00> : vector<1xf32>
    %206 = vector.multi_reduction <add>, %205, %cst_32 [1, 2] : vector<1x2x128xf32> to vector<1xf32>
    %207 = vector.shape_cast %206 : vector<1xf32> to vector<1x1x1xf32>
    %208 = vector.extract %207[0, 0, 0] : f32 from vector<1x1x1xf32>
    %209 = vector.broadcast %208 : f32 to vector<1x1xf32>
    %cst_33 = arith.constant 3.906250e-03 : f32
    %210 = vector.broadcast %cst_33 : f32 to vector<1x1xf32>
    %211 = arith.mulf %203, %210 : vector<1x1xf32>
    %cst_34 = arith.constant 3.906250e-03 : f32
    %212 = vector.broadcast %cst_34 : f32 to vector<1x1xf32>
    %213 = arith.mulf %209, %212 : vector<1x1xf32>
    %214 = arith.mulf %211, %211 : vector<1x1xf32>
    %215 = arith.subf %213, %214 : vector<1x1xf32>
    %cst_35 = arith.constant 0.000000e+00 : f32
    %216 = vector.broadcast %cst_35 : f32 to vector<1x1xf32>
    %217 = arith.maximumf %215, %216 : vector<1x1xf32>
    %c126 = arith.constant 126 : index
    %218 = memref.load %arg1[%c126] : memref<160xf32, #tpu.memory_space<smem>>
    %cst_36 = arith.constant 9.99999974E-6 : f32
    %219 = vector.broadcast %cst_36 : f32 to vector<1x1xf32>
    %220 = arith.addf %217, %219 : vector<1x1xf32>
    %221 = math.rsqrt %220 : vector<1x1xf32>
    %222 = vector.broadcast %218 : f32 to vector<1x1xf32>
    %223 = arith.mulf %222, %221 : vector<1x1xf32>
    %c131 = arith.constant 131 : index
    %224 = memref.load %arg1[%c131] : memref<160xf32, #tpu.memory_space<smem>>
    %225 = arith.mulf %211, %223 : vector<1x1xf32>
    %226 = vector.broadcast %224 : f32 to vector<1x1xf32>
    %227 = arith.subf %226, %225 : vector<1x1xf32>
    %228 = vector.broadcast %223 : vector<1x1xf32> to vector<2x128xf32>
    %229 = arith.mulf %80, %228 : vector<2x128xf32>
    %230 = vector.broadcast %227 : vector<1x1xf32> to vector<2x128xf32>
    %231 = arith.addf %229, %230 : vector<2x128xf32>
    %cst_37 = arith.constant 0.00999999977 : f32
    %232 = vector.broadcast %cst_37 : f32 to vector<2x128xf32>
    %233 = arith.mulf %232, %231 : vector<2x128xf32>
    %234 = arith.maximumf %231, %233 : vector<2x128xf32>
    %235 = vector.shape_cast %103 : vector<2x128xf32> to vector<1x2x128xf32>
    %cst_38 = arith.constant dense<0.000000e+00> : vector<1xf32>
    %236 = vector.multi_reduction <add>, %235, %cst_38 [1, 2] : vector<1x2x128xf32> to vector<1xf32>
    %237 = vector.shape_cast %236 : vector<1xf32> to vector<1x1x1xf32>
    %238 = vector.extract %237[0, 0, 0] : f32 from vector<1x1x1xf32>
    %239 = vector.broadcast %238 : f32 to vector<1x1xf32>
    %240 = arith.mulf %103, %103 : vector<2x128xf32>
    %241 = vector.shape_cast %240 : vector<2x128xf32> to vector<1x2x128xf32>
    %cst_39 = arith.constant dense<0.000000e+00> : vector<1xf32>
    %242 = vector.multi_reduction <add>, %241, %cst_39 [1, 2] : vector<1x2x128xf32> to vector<1xf32>
    %243 = vector.shape_cast %242 : vector<1xf32> to vector<1x1x1xf32>
    %244 = vector.extract %243[0, 0, 0] : f32 from vector<1x1x1xf32>
    %245 = vector.broadcast %244 : f32 to vector<1x1xf32>
    %cst_40 = arith.constant 3.906250e-03 : f32
    %246 = vector.broadcast %cst_40 : f32 to vector<1x1xf32>
    %247 = arith.mulf %239, %246 : vector<1x1xf32>
    %cst_41 = arith.constant 3.906250e-03 : f32
    %248 = vector.broadcast %cst_41 : f32 to vector<1x1xf32>
    %249 = arith.mulf %245, %248 : vector<1x1xf32>
    %250 = arith.mulf %247, %247 : vector<1x1xf32>
    %251 = arith.subf %249, %250 : vector<1x1xf32>
    %cst_42 = arith.constant 0.000000e+00 : f32
    %252 = vector.broadcast %cst_42 : f32 to vector<1x1xf32>
    %253 = arith.maximumf %251, %252 : vector<1x1xf32>
    %c127 = arith.constant 127 : index
    %254 = memref.load %arg1[%c127] : memref<160xf32, #tpu.memory_space<smem>>
    %cst_43 = arith.constant 9.99999974E-6 : f32
    %255 = vector.broadcast %cst_43 : f32 to vector<1x1xf32>
    %256 = arith.addf %253, %255 : vector<1x1xf32>
    %257 = math.rsqrt %256 : vector<1x1xf32>
    %258 = vector.broadcast %254 : f32 to vector<1x1xf32>
    %259 = arith.mulf %258, %257 : vector<1x1xf32>
    %c132 = arith.constant 132 : index
    %260 = memref.load %arg1[%c132] : memref<160xf32, #tpu.memory_space<smem>>
    %261 = arith.mulf %247, %259 : vector<1x1xf32>
    %262 = vector.broadcast %260 : f32 to vector<1x1xf32>
    %263 = arith.subf %262, %261 : vector<1x1xf32>
    %264 = vector.broadcast %259 : vector<1x1xf32> to vector<2x128xf32>
    %265 = arith.mulf %103, %264 : vector<2x128xf32>
    %266 = vector.broadcast %263 : vector<1x1xf32> to vector<2x128xf32>
    %267 = arith.addf %265, %266 : vector<2x128xf32>
    %cst_44 = arith.constant 0.00999999977 : f32
    %268 = vector.broadcast %cst_44 : f32 to vector<2x128xf32>
    %269 = arith.mulf %268, %267 : vector<2x128xf32>
    %270 = arith.maximumf %267, %269 : vector<2x128xf32>
    %271 = vector.shape_cast %126 : vector<2x128xf32> to vector<1x2x128xf32>
    %cst_45 = arith.constant dense<0.000000e+00> : vector<1xf32>
    %272 = vector.multi_reduction <add>, %271, %cst_45 [1, 2] : vector<1x2x128xf32> to vector<1xf32>
    %273 = vector.shape_cast %272 : vector<1xf32> to vector<1x1x1xf32>
    %274 = vector.extract %273[0, 0, 0] : f32 from vector<1x1x1xf32>
    %275 = vector.broadcast %274 : f32 to vector<1x1xf32>
    %276 = arith.mulf %126, %126 : vector<2x128xf32>
    %277 = vector.shape_cast %276 : vector<2x128xf32> to vector<1x2x128xf32>
    %cst_46 = arith.constant dense<0.000000e+00> : vector<1xf32>
    %278 = vector.multi_reduction <add>, %277, %cst_46 [1, 2] : vector<1x2x128xf32> to vector<1xf32>
    %279 = vector.shape_cast %278 : vector<1xf32> to vector<1x1x1xf32>
    %280 = vector.extract %279[0, 0, 0] : f32 from vector<1x1x1xf32>
    %281 = vector.broadcast %280 : f32 to vector<1x1xf32>
    %cst_47 = arith.constant 3.906250e-03 : f32
    %282 = vector.broadcast %cst_47 : f32 to vector<1x1xf32>
    %283 = arith.mulf %275, %282 : vector<1x1xf32>
    %cst_48 = arith.constant 3.906250e-03 : f32
    %284 = vector.broadcast %cst_48 : f32 to vector<1x1xf32>
    %285 = arith.mulf %281, %284 : vector<1x1xf32>
    %286 = arith.mulf %283, %283 : vector<1x1xf32>
    %287 = arith.subf %285, %286 : vector<1x1xf32>
    %cst_49 = arith.constant 0.000000e+00 : f32
    %288 = vector.broadcast %cst_49 : f32 to vector<1x1xf32>
    %289 = arith.maximumf %287, %288 : vector<1x1xf32>
    %c128 = arith.constant 128 : index
    %290 = memref.load %arg1[%c128] : memref<160xf32, #tpu.memory_space<smem>>
    %cst_50 = arith.constant 9.99999974E-6 : f32
    %291 = vector.broadcast %cst_50 : f32 to vector<1x1xf32>
    %292 = arith.addf %289, %291 : vector<1x1xf32>
    %293 = math.rsqrt %292 : vector<1x1xf32>
    %294 = vector.broadcast %290 : f32 to vector<1x1xf32>
    %295 = arith.mulf %294, %293 : vector<1x1xf32>
    %c133 = arith.constant 133 : index
    %296 = memref.load %arg1[%c133] : memref<160xf32, #tpu.memory_space<smem>>
    %297 = arith.mulf %283, %295 : vector<1x1xf32>
    %298 = vector.broadcast %296 : f32 to vector<1x1xf32>
    %299 = arith.subf %298, %297 : vector<1x1xf32>
    %300 = vector.broadcast %295 : vector<1x1xf32> to vector<2x128xf32>
    %301 = arith.mulf %126, %300 : vector<2x128xf32>
    %302 = vector.broadcast %299 : vector<1x1xf32> to vector<2x128xf32>
    %303 = arith.addf %301, %302 : vector<2x128xf32>
    %cst_51 = arith.constant 0.00999999977 : f32
    %304 = vector.broadcast %cst_51 : f32 to vector<2x128xf32>
    %305 = arith.mulf %304, %303 : vector<2x128xf32>
    %306 = arith.maximumf %303, %305 : vector<2x128xf32>
    %c30 = arith.constant 30 : index
    %307 = memref.load %arg1[%c30] : memref<160xf32, #tpu.memory_space<smem>>
    %308 = vector.broadcast %307 : f32 to vector<2x128xf32>
    %309 = arith.mulf %308, %162 : vector<2x128xf32>
    %c31 = arith.constant 31 : index
    %310 = memref.load %arg1[%c31] : memref<160xf32, #tpu.memory_space<smem>>
    %311 = vector.broadcast %310 : f32 to vector<2x128xf32>
    %312 = arith.mulf %311, %198 : vector<2x128xf32>
    %313 = arith.addf %309, %312 : vector<2x128xf32>
    %c32 = arith.constant 32 : index
    %314 = memref.load %arg1[%c32] : memref<160xf32, #tpu.memory_space<smem>>
    %315 = vector.broadcast %314 : f32 to vector<2x128xf32>
    %316 = arith.mulf %315, %234 : vector<2x128xf32>
    %317 = arith.addf %313, %316 : vector<2x128xf32>
    %c33 = arith.constant 33 : index
    %318 = memref.load %arg1[%c33] : memref<160xf32, #tpu.memory_space<smem>>
    %319 = vector.broadcast %318 : f32 to vector<2x128xf32>
    %320 = arith.mulf %319, %270 : vector<2x128xf32>
    %321 = arith.addf %317, %320 : vector<2x128xf32>
    %c34 = arith.constant 34 : index
    %322 = memref.load %arg1[%c34] : memref<160xf32, #tpu.memory_space<smem>>
    %323 = vector.broadcast %322 : f32 to vector<2x128xf32>
    %324 = arith.mulf %323, %306 : vector<2x128xf32>
    %325 = arith.addf %321, %324 : vector<2x128xf32>
    %c35 = arith.constant 35 : index
    %326 = memref.load %arg1[%c35] : memref<160xf32, #tpu.memory_space<smem>>
    %327 = vector.broadcast %326 : f32 to vector<2x128xf32>
    %328 = arith.mulf %327, %162 : vector<2x128xf32>
    %c36 = arith.constant 36 : index
    %329 = memref.load %arg1[%c36] : memref<160xf32, #tpu.memory_space<smem>>
    %330 = vector.broadcast %329 : f32 to vector<2x128xf32>
    %331 = arith.mulf %330, %198 : vector<2x128xf32>
    %332 = arith.addf %328, %331 : vector<2x128xf32>
    %c37 = arith.constant 37 : index
    %333 = memref.load %arg1[%c37] : memref<160xf32, #tpu.memory_space<smem>>
    %334 = vector.broadcast %333 : f32 to vector<2x128xf32>
    %335 = arith.mulf %334, %234 : vector<2x128xf32>
    %336 = arith.addf %332, %335 : vector<2x128xf32>
    %c38 = arith.constant 38 : index
    %337 = memref.load %arg1[%c38] : memref<160xf32, #tpu.memory_space<smem>>
    %338 = vector.broadcast %337 : f32 to vector<2x128xf32>
    %339 = arith.mulf %338, %270 : vector<2x128xf32>
    %340 = arith.addf %336, %339 : vector<2x128xf32>
    %c39 = arith.constant 39 : index
    %341 = memref.load %arg1[%c39] : memref<160xf32, #tpu.memory_space<smem>>
    %342 = vector.broadcast %341 : f32 to vector<2x128xf32>
    %343 = arith.mulf %342, %306 : vector<2x128xf32>
    %344 = arith.addf %340, %343 : vector<2x128xf32>
    %c40 = arith.constant 40 : index
    %345 = memref.load %arg1[%c40] : memref<160xf32, #tpu.memory_space<smem>>
    %346 = vector.broadcast %345 : f32 to vector<2x128xf32>
    %347 = arith.mulf %346, %162 : vector<2x128xf32>
    %c41 = arith.constant 41 : index
    %348 = memref.load %arg1[%c41] : memref<160xf32, #tpu.memory_space<smem>>
    %349 = vector.broadcast %348 : f32 to vector<2x128xf32>
    %350 = arith.mulf %349, %198 : vector<2x128xf32>
    %351 = arith.addf %347, %350 : vector<2x128xf32>
    %c42 = arith.constant 42 : index
    %352 = memref.load %arg1[%c42] : memref<160xf32, #tpu.memory_space<smem>>
    %353 = vector.broadcast %352 : f32 to vector<2x128xf32>
    %354 = arith.mulf %353, %234 : vector<2x128xf32>
    %355 = arith.addf %351, %354 : vector<2x128xf32>
    %c43 = arith.constant 43 : index
    %356 = memref.load %arg1[%c43] : memref<160xf32, #tpu.memory_space<smem>>
    %357 = vector.broadcast %356 : f32 to vector<2x128xf32>
    %358 = arith.mulf %357, %270 : vector<2x128xf32>
    %359 = arith.addf %355, %358 : vector<2x128xf32>
    %c44 = arith.constant 44 : index
    %360 = memref.load %arg1[%c44] : memref<160xf32, #tpu.memory_space<smem>>
    %361 = vector.broadcast %360 : f32 to vector<2x128xf32>
    %362 = arith.mulf %361, %306 : vector<2x128xf32>
    %363 = arith.addf %359, %362 : vector<2x128xf32>
    %c45 = arith.constant 45 : index
    %364 = memref.load %arg1[%c45] : memref<160xf32, #tpu.memory_space<smem>>
    %365 = vector.broadcast %364 : f32 to vector<2x128xf32>
    %366 = arith.mulf %365, %162 : vector<2x128xf32>
    %c46 = arith.constant 46 : index
    %367 = memref.load %arg1[%c46] : memref<160xf32, #tpu.memory_space<smem>>
    %368 = vector.broadcast %367 : f32 to vector<2x128xf32>
    %369 = arith.mulf %368, %198 : vector<2x128xf32>
    %370 = arith.addf %366, %369 : vector<2x128xf32>
    %c47 = arith.constant 47 : index
    %371 = memref.load %arg1[%c47] : memref<160xf32, #tpu.memory_space<smem>>
    %372 = vector.broadcast %371 : f32 to vector<2x128xf32>
    %373 = arith.mulf %372, %234 : vector<2x128xf32>
    %374 = arith.addf %370, %373 : vector<2x128xf32>
    %c48 = arith.constant 48 : index
    %375 = memref.load %arg1[%c48] : memref<160xf32, #tpu.memory_space<smem>>
    %376 = vector.broadcast %375 : f32 to vector<2x128xf32>
    %377 = arith.mulf %376, %270 : vector<2x128xf32>
    %378 = arith.addf %374, %377 : vector<2x128xf32>
    %c49 = arith.constant 49 : index
    %379 = memref.load %arg1[%c49] : memref<160xf32, #tpu.memory_space<smem>>
    %380 = vector.broadcast %379 : f32 to vector<2x128xf32>
    %381 = arith.mulf %380, %306 : vector<2x128xf32>
    %382 = arith.addf %378, %381 : vector<2x128xf32>
    %383 = vector.shape_cast %325 : vector<2x128xf32> to vector<1x2x128xf32>
    %cst_52 = arith.constant dense<0.000000e+00> : vector<1xf32>
    %384 = vector.multi_reduction <add>, %383, %cst_52 [1, 2] : vector<1x2x128xf32> to vector<1xf32>
    %385 = vector.shape_cast %384 : vector<1xf32> to vector<1x1x1xf32>
    %386 = vector.extract %385[0, 0, 0] : f32 from vector<1x1x1xf32>
    %387 = vector.broadcast %386 : f32 to vector<1x1xf32>
    %388 = arith.mulf %325, %325 : vector<2x128xf32>
    %389 = vector.shape_cast %388 : vector<2x128xf32> to vector<1x2x128xf32>
    %cst_53 = arith.constant dense<0.000000e+00> : vector<1xf32>
    %390 = vector.multi_reduction <add>, %389, %cst_53 [1, 2] : vector<1x2x128xf32> to vector<1xf32>
    %391 = vector.shape_cast %390 : vector<1xf32> to vector<1x1x1xf32>
    %392 = vector.extract %391[0, 0, 0] : f32 from vector<1x1x1xf32>
    %393 = vector.broadcast %392 : f32 to vector<1x1xf32>
    %cst_54 = arith.constant 3.906250e-03 : f32
    %394 = vector.broadcast %cst_54 : f32 to vector<1x1xf32>
    %395 = arith.mulf %387, %394 : vector<1x1xf32>
    %cst_55 = arith.constant 3.906250e-03 : f32
    %396 = vector.broadcast %cst_55 : f32 to vector<1x1xf32>
    %397 = arith.mulf %393, %396 : vector<1x1xf32>
    %398 = arith.mulf %395, %395 : vector<1x1xf32>
    %399 = arith.subf %397, %398 : vector<1x1xf32>
    %cst_56 = arith.constant 0.000000e+00 : f32
    %400 = vector.broadcast %cst_56 : f32 to vector<1x1xf32>
    %401 = arith.maximumf %399, %400 : vector<1x1xf32>
    %c134 = arith.constant 134 : index
    %402 = memref.load %arg1[%c134] : memref<160xf32, #tpu.memory_space<smem>>
    %cst_57 = arith.constant 9.99999974E-6 : f32
    %403 = vector.broadcast %cst_57 : f32 to vector<1x1xf32>
    %404 = arith.addf %401, %403 : vector<1x1xf32>
    %405 = math.rsqrt %404 : vector<1x1xf32>
    %406 = vector.broadcast %402 : f32 to vector<1x1xf32>
    %407 = arith.mulf %406, %405 : vector<1x1xf32>
    %c138 = arith.constant 138 : index
    %408 = memref.load %arg1[%c138] : memref<160xf32, #tpu.memory_space<smem>>
    %409 = arith.mulf %395, %407 : vector<1x1xf32>
    %410 = vector.broadcast %408 : f32 to vector<1x1xf32>
    %411 = arith.subf %410, %409 : vector<1x1xf32>
    %412 = vector.broadcast %407 : vector<1x1xf32> to vector<2x128xf32>
    %413 = arith.mulf %325, %412 : vector<2x128xf32>
    %414 = vector.broadcast %411 : vector<1x1xf32> to vector<2x128xf32>
    %415 = arith.addf %413, %414 : vector<2x128xf32>
    %cst_58 = arith.constant 0.00999999977 : f32
    %416 = vector.broadcast %cst_58 : f32 to vector<2x128xf32>
    %417 = arith.mulf %416, %415 : vector<2x128xf32>
    %418 = arith.maximumf %415, %417 : vector<2x128xf32>
    %419 = vector.shape_cast %344 : vector<2x128xf32> to vector<1x2x128xf32>
    %cst_59 = arith.constant dense<0.000000e+00> : vector<1xf32>
    %420 = vector.multi_reduction <add>, %419, %cst_59 [1, 2] : vector<1x2x128xf32> to vector<1xf32>
    %421 = vector.shape_cast %420 : vector<1xf32> to vector<1x1x1xf32>
    %422 = vector.extract %421[0, 0, 0] : f32 from vector<1x1x1xf32>
    %423 = vector.broadcast %422 : f32 to vector<1x1xf32>
    %424 = arith.mulf %344, %344 : vector<2x128xf32>
    %425 = vector.shape_cast %424 : vector<2x128xf32> to vector<1x2x128xf32>
    %cst_60 = arith.constant dense<0.000000e+00> : vector<1xf32>
    %426 = vector.multi_reduction <add>, %425, %cst_60 [1, 2] : vector<1x2x128xf32> to vector<1xf32>
    %427 = vector.shape_cast %426 : vector<1xf32> to vector<1x1x1xf32>
    %428 = vector.extract %427[0, 0, 0] : f32 from vector<1x1x1xf32>
    %429 = vector.broadcast %428 : f32 to vector<1x1xf32>
    %cst_61 = arith.constant 3.906250e-03 : f32
    %430 = vector.broadcast %cst_61 : f32 to vector<1x1xf32>
    %431 = arith.mulf %423, %430 : vector<1x1xf32>
    %cst_62 = arith.constant 3.906250e-03 : f32
    %432 = vector.broadcast %cst_62 : f32 to vector<1x1xf32>
    %433 = arith.mulf %429, %432 : vector<1x1xf32>
    %434 = arith.mulf %431, %431 : vector<1x1xf32>
    %435 = arith.subf %433, %434 : vector<1x1xf32>
    %cst_63 = arith.constant 0.000000e+00 : f32
    %436 = vector.broadcast %cst_63 : f32 to vector<1x1xf32>
    %437 = arith.maximumf %435, %436 : vector<1x1xf32>
    %c135 = arith.constant 135 : index
    %438 = memref.load %arg1[%c135] : memref<160xf32, #tpu.memory_space<smem>>
    %cst_64 = arith.constant 9.99999974E-6 : f32
    %439 = vector.broadcast %cst_64 : f32 to vector<1x1xf32>
    %440 = arith.addf %437, %439 : vector<1x1xf32>
    %441 = math.rsqrt %440 : vector<1x1xf32>
    %442 = vector.broadcast %438 : f32 to vector<1x1xf32>
    %443 = arith.mulf %442, %441 : vector<1x1xf32>
    %c139 = arith.constant 139 : index
    %444 = memref.load %arg1[%c139] : memref<160xf32, #tpu.memory_space<smem>>
    %445 = arith.mulf %431, %443 : vector<1x1xf32>
    %446 = vector.broadcast %444 : f32 to vector<1x1xf32>
    %447 = arith.subf %446, %445 : vector<1x1xf32>
    %448 = vector.broadcast %443 : vector<1x1xf32> to vector<2x128xf32>
    %449 = arith.mulf %344, %448 : vector<2x128xf32>
    %450 = vector.broadcast %447 : vector<1x1xf32> to vector<2x128xf32>
    %451 = arith.addf %449, %450 : vector<2x128xf32>
    %cst_65 = arith.constant 0.00999999977 : f32
    %452 = vector.broadcast %cst_65 : f32 to vector<2x128xf32>
    %453 = arith.mulf %452, %451 : vector<2x128xf32>
    %454 = arith.maximumf %451, %453 : vector<2x128xf32>
    %455 = vector.shape_cast %363 : vector<2x128xf32> to vector<1x2x128xf32>
    %cst_66 = arith.constant dense<0.000000e+00> : vector<1xf32>
    %456 = vector.multi_reduction <add>, %455, %cst_66 [1, 2] : vector<1x2x128xf32> to vector<1xf32>
    %457 = vector.shape_cast %456 : vector<1xf32> to vector<1x1x1xf32>
    %458 = vector.extract %457[0, 0, 0] : f32 from vector<1x1x1xf32>
    %459 = vector.broadcast %458 : f32 to vector<1x1xf32>
    %460 = arith.mulf %363, %363 : vector<2x128xf32>
    %461 = vector.shape_cast %460 : vector<2x128xf32> to vector<1x2x128xf32>
    %cst_67 = arith.constant dense<0.000000e+00> : vector<1xf32>
    %462 = vector.multi_reduction <add>, %461, %cst_67 [1, 2] : vector<1x2x128xf32> to vector<1xf32>
    %463 = vector.shape_cast %462 : vector<1xf32> to vector<1x1x1xf32>
    %464 = vector.extract %463[0, 0, 0] : f32 from vector<1x1x1xf32>
    %465 = vector.broadcast %464 : f32 to vector<1x1xf32>
    %cst_68 = arith.constant 3.906250e-03 : f32
    %466 = vector.broadcast %cst_68 : f32 to vector<1x1xf32>
    %467 = arith.mulf %459, %466 : vector<1x1xf32>
    %cst_69 = arith.constant 3.906250e-03 : f32
    %468 = vector.broadcast %cst_69 : f32 to vector<1x1xf32>
    %469 = arith.mulf %465, %468 : vector<1x1xf32>
    %470 = arith.mulf %467, %467 : vector<1x1xf32>
    %471 = arith.subf %469, %470 : vector<1x1xf32>
    %cst_70 = arith.constant 0.000000e+00 : f32
    %472 = vector.broadcast %cst_70 : f32 to vector<1x1xf32>
    %473 = arith.maximumf %471, %472 : vector<1x1xf32>
    %c136 = arith.constant 136 : index
    %474 = memref.load %arg1[%c136] : memref<160xf32, #tpu.memory_space<smem>>
    %cst_71 = arith.constant 9.99999974E-6 : f32
    %475 = vector.broadcast %cst_71 : f32 to vector<1x1xf32>
    %476 = arith.addf %473, %475 : vector<1x1xf32>
    %477 = math.rsqrt %476 : vector<1x1xf32>
    %478 = vector.broadcast %474 : f32 to vector<1x1xf32>
    %479 = arith.mulf %478, %477 : vector<1x1xf32>
    %c140 = arith.constant 140 : index
    %480 = memref.load %arg1[%c140] : memref<160xf32, #tpu.memory_space<smem>>
    %481 = arith.mulf %467, %479 : vector<1x1xf32>
    %482 = vector.broadcast %480 : f32 to vector<1x1xf32>
    %483 = arith.subf %482, %481 : vector<1x1xf32>
    %484 = vector.broadcast %479 : vector<1x1xf32> to vector<2x128xf32>
    %485 = arith.mulf %363, %484 : vector<2x128xf32>
    %486 = vector.broadcast %483 : vector<1x1xf32> to vector<2x128xf32>
    %487 = arith.addf %485, %486 : vector<2x128xf32>
    %cst_72 = arith.constant 0.00999999977 : f32
    %488 = vector.broadcast %cst_72 : f32 to vector<2x128xf32>
    %489 = arith.mulf %488, %487 : vector<2x128xf32>
    %490 = arith.maximumf %487, %489 : vector<2x128xf32>
    %491 = vector.shape_cast %382 : vector<2x128xf32> to vector<1x2x128xf32>
    %cst_73 = arith.constant dense<0.000000e+00> : vector<1xf32>
    %492 = vector.multi_reduction <add>, %491, %cst_73 [1, 2] : vector<1x2x128xf32> to vector<1xf32>
    %493 = vector.shape_cast %492 : vector<1xf32> to vector<1x1x1xf32>
    %494 = vector.extract %493[0, 0, 0] : f32 from vector<1x1x1xf32>
    %495 = vector.broadcast %494 : f32 to vector<1x1xf32>
    %496 = arith.mulf %382, %382 : vector<2x128xf32>
    %497 = vector.shape_cast %496 : vector<2x128xf32> to vector<1x2x128xf32>
    %cst_74 = arith.constant dense<0.000000e+00> : vector<1xf32>
    %498 = vector.multi_reduction <add>, %497, %cst_74 [1, 2] : vector<1x2x128xf32> to vector<1xf32>
    %499 = vector.shape_cast %498 : vector<1xf32> to vector<1x1x1xf32>
    %500 = vector.extract %499[0, 0, 0] : f32 from vector<1x1x1xf32>
    %501 = vector.broadcast %500 : f32 to vector<1x1xf32>
    %cst_75 = arith.constant 3.906250e-03 : f32
    %502 = vector.broadcast %cst_75 : f32 to vector<1x1xf32>
    %503 = arith.mulf %495, %502 : vector<1x1xf32>
    %cst_76 = arith.constant 3.906250e-03 : f32
    %504 = vector.broadcast %cst_76 : f32 to vector<1x1xf32>
    %505 = arith.mulf %501, %504 : vector<1x1xf32>
    %506 = arith.mulf %503, %503 : vector<1x1xf32>
    %507 = arith.subf %505, %506 : vector<1x1xf32>
    %cst_77 = arith.constant 0.000000e+00 : f32
    %508 = vector.broadcast %cst_77 : f32 to vector<1x1xf32>
    %509 = arith.maximumf %507, %508 : vector<1x1xf32>
    %c137 = arith.constant 137 : index
    %510 = memref.load %arg1[%c137] : memref<160xf32, #tpu.memory_space<smem>>
    %cst_78 = arith.constant 9.99999974E-6 : f32
    %511 = vector.broadcast %cst_78 : f32 to vector<1x1xf32>
    %512 = arith.addf %509, %511 : vector<1x1xf32>
    %513 = math.rsqrt %512 : vector<1x1xf32>
    %514 = vector.broadcast %510 : f32 to vector<1x1xf32>
    %515 = arith.mulf %514, %513 : vector<1x1xf32>
    %c141 = arith.constant 141 : index
    %516 = memref.load %arg1[%c141] : memref<160xf32, #tpu.memory_space<smem>>
    %517 = arith.mulf %503, %515 : vector<1x1xf32>
    %518 = vector.broadcast %516 : f32 to vector<1x1xf32>
    %519 = arith.subf %518, %517 : vector<1x1xf32>
    %520 = vector.broadcast %515 : vector<1x1xf32> to vector<2x128xf32>
    %521 = arith.mulf %382, %520 : vector<2x128xf32>
    %522 = vector.broadcast %519 : vector<1x1xf32> to vector<2x128xf32>
    %523 = arith.addf %521, %522 : vector<2x128xf32>
    %cst_79 = arith.constant 0.00999999977 : f32
    %524 = vector.broadcast %cst_79 : f32 to vector<2x128xf32>
    %525 = arith.mulf %524, %523 : vector<2x128xf32>
    %526 = arith.maximumf %523, %525 : vector<2x128xf32>
    %c50 = arith.constant 50 : index
    %527 = memref.load %arg1[%c50] : memref<160xf32, #tpu.memory_space<smem>>
    %528 = vector.broadcast %527 : f32 to vector<2x128xf32>
    %529 = arith.mulf %528, %418 : vector<2x128xf32>
    %c51 = arith.constant 51 : index
    %530 = memref.load %arg1[%c51] : memref<160xf32, #tpu.memory_space<smem>>
    %531 = vector.broadcast %530 : f32 to vector<2x128xf32>
    %532 = arith.mulf %531, %454 : vector<2x128xf32>
    %533 = arith.addf %529, %532 : vector<2x128xf32>
    %c52 = arith.constant 52 : index
    %534 = memref.load %arg1[%c52] : memref<160xf32, #tpu.memory_space<smem>>
    %535 = vector.broadcast %534 : f32 to vector<2x128xf32>
    %536 = arith.mulf %535, %490 : vector<2x128xf32>
    %537 = arith.addf %533, %536 : vector<2x128xf32>
    %c53 = arith.constant 53 : index
    %538 = memref.load %arg1[%c53] : memref<160xf32, #tpu.memory_space<smem>>
    %539 = vector.broadcast %538 : f32 to vector<2x128xf32>
    %540 = arith.mulf %539, %526 : vector<2x128xf32>
    %541 = arith.addf %537, %540 : vector<2x128xf32>
    %c54 = arith.constant 54 : index
    %542 = memref.load %arg1[%c54] : memref<160xf32, #tpu.memory_space<smem>>
    %543 = vector.broadcast %542 : f32 to vector<2x128xf32>
    %544 = arith.mulf %543, %418 : vector<2x128xf32>
    %c55 = arith.constant 55 : index
    %545 = memref.load %arg1[%c55] : memref<160xf32, #tpu.memory_space<smem>>
    %546 = vector.broadcast %545 : f32 to vector<2x128xf32>
    %547 = arith.mulf %546, %454 : vector<2x128xf32>
    %548 = arith.addf %544, %547 : vector<2x128xf32>
    %c56 = arith.constant 56 : index
    %549 = memref.load %arg1[%c56] : memref<160xf32, #tpu.memory_space<smem>>
    %550 = vector.broadcast %549 : f32 to vector<2x128xf32>
    %551 = arith.mulf %550, %490 : vector<2x128xf32>
    %552 = arith.addf %548, %551 : vector<2x128xf32>
    %c57 = arith.constant 57 : index
    %553 = memref.load %arg1[%c57] : memref<160xf32, #tpu.memory_space<smem>>
    %554 = vector.broadcast %553 : f32 to vector<2x128xf32>
    %555 = arith.mulf %554, %526 : vector<2x128xf32>
    %556 = arith.addf %552, %555 : vector<2x128xf32>
    %c116 = arith.constant 116 : index
    %557 = memref.load %arg1[%c116] : memref<160xf32, #tpu.memory_space<smem>>
    %558 = vector.broadcast %557 : f32 to vector<2x128xf32>
    %559 = arith.addf %541, %558 : vector<2x128xf32>
    %c117 = arith.constant 117 : index
    %560 = memref.load %arg1[%c117] : memref<160xf32, #tpu.memory_space<smem>>
    %561 = vector.broadcast %560 : f32 to vector<2x128xf32>
    %562 = arith.addf %556, %561 : vector<2x128xf32>
    %c58 = arith.constant 58 : index
    %563 = memref.load %arg1[%c58] : memref<160xf32, #tpu.memory_space<smem>>
    %564 = vector.broadcast %563 : f32 to vector<2x128xf32>
    %565 = arith.mulf %564, %559 : vector<2x128xf32>
    %c59 = arith.constant 59 : index
    %566 = memref.load %arg1[%c59] : memref<160xf32, #tpu.memory_space<smem>>
    %567 = vector.broadcast %566 : f32 to vector<2x128xf32>
    %568 = arith.mulf %567, %562 : vector<2x128xf32>
    %569 = arith.addf %565, %568 : vector<2x128xf32>
    %c60 = arith.constant 60 : index
    %570 = memref.load %arg1[%c60] : memref<160xf32, #tpu.memory_space<smem>>
    %571 = vector.broadcast %570 : f32 to vector<2x128xf32>
    %572 = arith.mulf %571, %559 : vector<2x128xf32>
    %c61 = arith.constant 61 : index
    %573 = memref.load %arg1[%c61] : memref<160xf32, #tpu.memory_space<smem>>
    %574 = vector.broadcast %573 : f32 to vector<2x128xf32>
    %575 = arith.mulf %574, %562 : vector<2x128xf32>
    %576 = arith.addf %572, %575 : vector<2x128xf32>
    %c62 = arith.constant 62 : index
    %577 = memref.load %arg1[%c62] : memref<160xf32, #tpu.memory_space<smem>>
    %578 = vector.broadcast %577 : f32 to vector<2x128xf32>
    %579 = arith.mulf %578, %559 : vector<2x128xf32>
    %c63 = arith.constant 63 : index
    %580 = memref.load %arg1[%c63] : memref<160xf32, #tpu.memory_space<smem>>
    %581 = vector.broadcast %580 : f32 to vector<2x128xf32>
    %582 = arith.mulf %581, %562 : vector<2x128xf32>
    %583 = arith.addf %579, %582 : vector<2x128xf32>
    %c64 = arith.constant 64 : index
    %584 = memref.load %arg1[%c64] : memref<160xf32, #tpu.memory_space<smem>>
    %585 = vector.broadcast %584 : f32 to vector<2x128xf32>
    %586 = arith.mulf %585, %559 : vector<2x128xf32>
    %c65 = arith.constant 65 : index
    %587 = memref.load %arg1[%c65] : memref<160xf32, #tpu.memory_space<smem>>
    %588 = vector.broadcast %587 : f32 to vector<2x128xf32>
    %589 = arith.mulf %588, %562 : vector<2x128xf32>
    %590 = arith.addf %586, %589 : vector<2x128xf32>
    %591 = vector.shape_cast %569 : vector<2x128xf32> to vector<1x2x128xf32>
    %cst_80 = arith.constant dense<0.000000e+00> : vector<1xf32>
    %592 = vector.multi_reduction <add>, %591, %cst_80 [1, 2] : vector<1x2x128xf32> to vector<1xf32>
    %593 = vector.shape_cast %592 : vector<1xf32> to vector<1x1x1xf32>
    %594 = vector.extract %593[0, 0, 0] : f32 from vector<1x1x1xf32>
    %595 = vector.broadcast %594 : f32 to vector<1x1xf32>
    %596 = arith.mulf %569, %569 : vector<2x128xf32>
    %597 = vector.shape_cast %596 : vector<2x128xf32> to vector<1x2x128xf32>
    %cst_81 = arith.constant dense<0.000000e+00> : vector<1xf32>
    %598 = vector.multi_reduction <add>, %597, %cst_81 [1, 2] : vector<1x2x128xf32> to vector<1xf32>
    %599 = vector.shape_cast %598 : vector<1xf32> to vector<1x1x1xf32>
    %600 = vector.extract %599[0, 0, 0] : f32 from vector<1x1x1xf32>
    %601 = vector.broadcast %600 : f32 to vector<1x1xf32>
    %cst_82 = arith.constant 3.906250e-03 : f32
    %602 = vector.broadcast %cst_82 : f32 to vector<1x1xf32>
    %603 = arith.mulf %595, %602 : vector<1x1xf32>
    %cst_83 = arith.constant 3.906250e-03 : f32
    %604 = vector.broadcast %cst_83 : f32 to vector<1x1xf32>
    %605 = arith.mulf %601, %604 : vector<1x1xf32>
    %606 = arith.mulf %603, %603 : vector<1x1xf32>
    %607 = arith.subf %605, %606 : vector<1x1xf32>
    %cst_84 = arith.constant 0.000000e+00 : f32
    %608 = vector.broadcast %cst_84 : f32 to vector<1x1xf32>
    %609 = arith.maximumf %607, %608 : vector<1x1xf32>
    %c142 = arith.constant 142 : index
    %610 = memref.load %arg1[%c142] : memref<160xf32, #tpu.memory_space<smem>>
    %cst_85 = arith.constant 9.99999974E-6 : f32
    %611 = vector.broadcast %cst_85 : f32 to vector<1x1xf32>
    %612 = arith.addf %609, %611 : vector<1x1xf32>
    %613 = math.rsqrt %612 : vector<1x1xf32>
    %614 = vector.broadcast %610 : f32 to vector<1x1xf32>
    %615 = arith.mulf %614, %613 : vector<1x1xf32>
    %c146 = arith.constant 146 : index
    %616 = memref.load %arg1[%c146] : memref<160xf32, #tpu.memory_space<smem>>
    %617 = arith.mulf %603, %615 : vector<1x1xf32>
    %618 = vector.broadcast %616 : f32 to vector<1x1xf32>
    %619 = arith.subf %618, %617 : vector<1x1xf32>
    %620 = vector.broadcast %615 : vector<1x1xf32> to vector<2x128xf32>
    %621 = arith.mulf %569, %620 : vector<2x128xf32>
    %622 = vector.broadcast %619 : vector<1x1xf32> to vector<2x128xf32>
    %623 = arith.addf %621, %622 : vector<2x128xf32>
    %cst_86 = arith.constant 0.00999999977 : f32
    %624 = vector.broadcast %cst_86 : f32 to vector<2x128xf32>
    %625 = arith.mulf %624, %623 : vector<2x128xf32>
    %626 = arith.maximumf %623, %625 : vector<2x128xf32>
    %627 = vector.shape_cast %576 : vector<2x128xf32> to vector<1x2x128xf32>
    %cst_87 = arith.constant dense<0.000000e+00> : vector<1xf32>
    %628 = vector.multi_reduction <add>, %627, %cst_87 [1, 2] : vector<1x2x128xf32> to vector<1xf32>
    %629 = vector.shape_cast %628 : vector<1xf32> to vector<1x1x1xf32>
    %630 = vector.extract %629[0, 0, 0] : f32 from vector<1x1x1xf32>
    %631 = vector.broadcast %630 : f32 to vector<1x1xf32>
    %632 = arith.mulf %576, %576 : vector<2x128xf32>
    %633 = vector.shape_cast %632 : vector<2x128xf32> to vector<1x2x128xf32>
    %cst_88 = arith.constant dense<0.000000e+00> : vector<1xf32>
    %634 = vector.multi_reduction <add>, %633, %cst_88 [1, 2] : vector<1x2x128xf32> to vector<1xf32>
    %635 = vector.shape_cast %634 : vector<1xf32> to vector<1x1x1xf32>
    %636 = vector.extract %635[0, 0, 0] : f32 from vector<1x1x1xf32>
    %637 = vector.broadcast %636 : f32 to vector<1x1xf32>
    %cst_89 = arith.constant 3.906250e-03 : f32
    %638 = vector.broadcast %cst_89 : f32 to vector<1x1xf32>
    %639 = arith.mulf %631, %638 : vector<1x1xf32>
    %cst_90 = arith.constant 3.906250e-03 : f32
    %640 = vector.broadcast %cst_90 : f32 to vector<1x1xf32>
    %641 = arith.mulf %637, %640 : vector<1x1xf32>
    %642 = arith.mulf %639, %639 : vector<1x1xf32>
    %643 = arith.subf %641, %642 : vector<1x1xf32>
    %cst_91 = arith.constant 0.000000e+00 : f32
    %644 = vector.broadcast %cst_91 : f32 to vector<1x1xf32>
    %645 = arith.maximumf %643, %644 : vector<1x1xf32>
    %c143 = arith.constant 143 : index
    %646 = memref.load %arg1[%c143] : memref<160xf32, #tpu.memory_space<smem>>
    %cst_92 = arith.constant 9.99999974E-6 : f32
    %647 = vector.broadcast %cst_92 : f32 to vector<1x1xf32>
    %648 = arith.addf %645, %647 : vector<1x1xf32>
    %649 = math.rsqrt %648 : vector<1x1xf32>
    %650 = vector.broadcast %646 : f32 to vector<1x1xf32>
    %651 = arith.mulf %650, %649 : vector<1x1xf32>
    %c147 = arith.constant 147 : index
    %652 = memref.load %arg1[%c147] : memref<160xf32, #tpu.memory_space<smem>>
    %653 = arith.mulf %639, %651 : vector<1x1xf32>
    %654 = vector.broadcast %652 : f32 to vector<1x1xf32>
    %655 = arith.subf %654, %653 : vector<1x1xf32>
    %656 = vector.broadcast %651 : vector<1x1xf32> to vector<2x128xf32>
    %657 = arith.mulf %576, %656 : vector<2x128xf32>
    %658 = vector.broadcast %655 : vector<1x1xf32> to vector<2x128xf32>
    %659 = arith.addf %657, %658 : vector<2x128xf32>
    %cst_93 = arith.constant 0.00999999977 : f32
    %660 = vector.broadcast %cst_93 : f32 to vector<2x128xf32>
    %661 = arith.mulf %660, %659 : vector<2x128xf32>
    %662 = arith.maximumf %659, %661 : vector<2x128xf32>
    %663 = vector.shape_cast %583 : vector<2x128xf32> to vector<1x2x128xf32>
    %cst_94 = arith.constant dense<0.000000e+00> : vector<1xf32>
    %664 = vector.multi_reduction <add>, %663, %cst_94 [1, 2] : vector<1x2x128xf32> to vector<1xf32>
    %665 = vector.shape_cast %664 : vector<1xf32> to vector<1x1x1xf32>
    %666 = vector.extract %665[0, 0, 0] : f32 from vector<1x1x1xf32>
    %667 = vector.broadcast %666 : f32 to vector<1x1xf32>
    %668 = arith.mulf %583, %583 : vector<2x128xf32>
    %669 = vector.shape_cast %668 : vector<2x128xf32> to vector<1x2x128xf32>
    %cst_95 = arith.constant dense<0.000000e+00> : vector<1xf32>
    %670 = vector.multi_reduction <add>, %669, %cst_95 [1, 2] : vector<1x2x128xf32> to vector<1xf32>
    %671 = vector.shape_cast %670 : vector<1xf32> to vector<1x1x1xf32>
    %672 = vector.extract %671[0, 0, 0] : f32 from vector<1x1x1xf32>
    %673 = vector.broadcast %672 : f32 to vector<1x1xf32>
    %cst_96 = arith.constant 3.906250e-03 : f32
    %674 = vector.broadcast %cst_96 : f32 to vector<1x1xf32>
    %675 = arith.mulf %667, %674 : vector<1x1xf32>
    %cst_97 = arith.constant 3.906250e-03 : f32
    %676 = vector.broadcast %cst_97 : f32 to vector<1x1xf32>
    %677 = arith.mulf %673, %676 : vector<1x1xf32>
    %678 = arith.mulf %675, %675 : vector<1x1xf32>
    %679 = arith.subf %677, %678 : vector<1x1xf32>
    %cst_98 = arith.constant 0.000000e+00 : f32
    %680 = vector.broadcast %cst_98 : f32 to vector<1x1xf32>
    %681 = arith.maximumf %679, %680 : vector<1x1xf32>
    %c144 = arith.constant 144 : index
    %682 = memref.load %arg1[%c144] : memref<160xf32, #tpu.memory_space<smem>>
    %cst_99 = arith.constant 9.99999974E-6 : f32
    %683 = vector.broadcast %cst_99 : f32 to vector<1x1xf32>
    %684 = arith.addf %681, %683 : vector<1x1xf32>
    %685 = math.rsqrt %684 : vector<1x1xf32>
    %686 = vector.broadcast %682 : f32 to vector<1x1xf32>
    %687 = arith.mulf %686, %685 : vector<1x1xf32>
    %c148 = arith.constant 148 : index
    %688 = memref.load %arg1[%c148] : memref<160xf32, #tpu.memory_space<smem>>
    %689 = arith.mulf %675, %687 : vector<1x1xf32>
    %690 = vector.broadcast %688 : f32 to vector<1x1xf32>
    %691 = arith.subf %690, %689 : vector<1x1xf32>
    %692 = vector.broadcast %687 : vector<1x1xf32> to vector<2x128xf32>
    %693 = arith.mulf %583, %692 : vector<2x128xf32>
    %694 = vector.broadcast %691 : vector<1x1xf32> to vector<2x128xf32>
    %695 = arith.addf %693, %694 : vector<2x128xf32>
    %cst_100 = arith.constant 0.00999999977 : f32
    %696 = vector.broadcast %cst_100 : f32 to vector<2x128xf32>
    %697 = arith.mulf %696, %695 : vector<2x128xf32>
    %698 = arith.maximumf %695, %697 : vector<2x128xf32>
    %699 = vector.shape_cast %590 : vector<2x128xf32> to vector<1x2x128xf32>
    %cst_101 = arith.constant dense<0.000000e+00> : vector<1xf32>
    %700 = vector.multi_reduction <add>, %699, %cst_101 [1, 2] : vector<1x2x128xf32> to vector<1xf32>
    %701 = vector.shape_cast %700 : vector<1xf32> to vector<1x1x1xf32>
    %702 = vector.extract %701[0, 0, 0] : f32 from vector<1x1x1xf32>
    %703 = vector.broadcast %702 : f32 to vector<1x1xf32>
    %704 = arith.mulf %590, %590 : vector<2x128xf32>
    %705 = vector.shape_cast %704 : vector<2x128xf32> to vector<1x2x128xf32>
    %cst_102 = arith.constant dense<0.000000e+00> : vector<1xf32>
    %706 = vector.multi_reduction <add>, %705, %cst_102 [1, 2] : vector<1x2x128xf32> to vector<1xf32>
    %707 = vector.shape_cast %706 : vector<1xf32> to vector<1x1x1xf32>
    %708 = vector.extract %707[0, 0, 0] : f32 from vector<1x1x1xf32>
    %709 = vector.broadcast %708 : f32 to vector<1x1xf32>
    %cst_103 = arith.constant 3.906250e-03 : f32
    %710 = vector.broadcast %cst_103 : f32 to vector<1x1xf32>
    %711 = arith.mulf %703, %710 : vector<1x1xf32>
    %cst_104 = arith.constant 3.906250e-03 : f32
    %712 = vector.broadcast %cst_104 : f32 to vector<1x1xf32>
    %713 = arith.mulf %709, %712 : vector<1x1xf32>
    %714 = arith.mulf %711, %711 : vector<1x1xf32>
    %715 = arith.subf %713, %714 : vector<1x1xf32>
    %cst_105 = arith.constant 0.000000e+00 : f32
    %716 = vector.broadcast %cst_105 : f32 to vector<1x1xf32>
    %717 = arith.maximumf %715, %716 : vector<1x1xf32>
    %c145 = arith.constant 145 : index
    %718 = memref.load %arg1[%c145] : memref<160xf32, #tpu.memory_space<smem>>
    %cst_106 = arith.constant 9.99999974E-6 : f32
    %719 = vector.broadcast %cst_106 : f32 to vector<1x1xf32>
    %720 = arith.addf %717, %719 : vector<1x1xf32>
    %721 = math.rsqrt %720 : vector<1x1xf32>
    %722 = vector.broadcast %718 : f32 to vector<1x1xf32>
    %723 = arith.mulf %722, %721 : vector<1x1xf32>
    %c149 = arith.constant 149 : index
    %724 = memref.load %arg1[%c149] : memref<160xf32, #tpu.memory_space<smem>>
    %725 = arith.mulf %711, %723 : vector<1x1xf32>
    %726 = vector.broadcast %724 : f32 to vector<1x1xf32>
    %727 = arith.subf %726, %725 : vector<1x1xf32>
    %728 = vector.broadcast %723 : vector<1x1xf32> to vector<2x128xf32>
    %729 = arith.mulf %590, %728 : vector<2x128xf32>
    %730 = vector.broadcast %727 : vector<1x1xf32> to vector<2x128xf32>
    %731 = arith.addf %729, %730 : vector<2x128xf32>
    %cst_107 = arith.constant 0.00999999977 : f32
    %732 = vector.broadcast %cst_107 : f32 to vector<2x128xf32>
    %733 = arith.mulf %732, %731 : vector<2x128xf32>
    %734 = arith.maximumf %731, %733 : vector<2x128xf32>
    %c66 = arith.constant 66 : index
    %735 = memref.load %arg1[%c66] : memref<160xf32, #tpu.memory_space<smem>>
    %736 = vector.broadcast %735 : f32 to vector<2x128xf32>
    %737 = arith.mulf %736, %626 : vector<2x128xf32>
    %c67 = arith.constant 67 : index
    %738 = memref.load %arg1[%c67] : memref<160xf32, #tpu.memory_space<smem>>
    %739 = vector.broadcast %738 : f32 to vector<2x128xf32>
    %740 = arith.mulf %739, %662 : vector<2x128xf32>
    %741 = arith.addf %737, %740 : vector<2x128xf32>
    %c68 = arith.constant 68 : index
    %742 = memref.load %arg1[%c68] : memref<160xf32, #tpu.memory_space<smem>>
    %743 = vector.broadcast %742 : f32 to vector<2x128xf32>
    %744 = arith.mulf %743, %698 : vector<2x128xf32>
    %745 = arith.addf %741, %744 : vector<2x128xf32>
    %c69 = arith.constant 69 : index
    %746 = memref.load %arg1[%c69] : memref<160xf32, #tpu.memory_space<smem>>
    %747 = vector.broadcast %746 : f32 to vector<2x128xf32>
    %748 = arith.mulf %747, %734 : vector<2x128xf32>
    %749 = arith.addf %745, %748 : vector<2x128xf32>
    %c70 = arith.constant 70 : index
    %750 = memref.load %arg1[%c70] : memref<160xf32, #tpu.memory_space<smem>>
    %751 = vector.broadcast %750 : f32 to vector<2x128xf32>
    %752 = arith.mulf %751, %626 : vector<2x128xf32>
    %c71 = arith.constant 71 : index
    %753 = memref.load %arg1[%c71] : memref<160xf32, #tpu.memory_space<smem>>
    %754 = vector.broadcast %753 : f32 to vector<2x128xf32>
    %755 = arith.mulf %754, %662 : vector<2x128xf32>
    %756 = arith.addf %752, %755 : vector<2x128xf32>
    %c72 = arith.constant 72 : index
    %757 = memref.load %arg1[%c72] : memref<160xf32, #tpu.memory_space<smem>>
    %758 = vector.broadcast %757 : f32 to vector<2x128xf32>
    %759 = arith.mulf %758, %698 : vector<2x128xf32>
    %760 = arith.addf %756, %759 : vector<2x128xf32>
    %c73 = arith.constant 73 : index
    %761 = memref.load %arg1[%c73] : memref<160xf32, #tpu.memory_space<smem>>
    %762 = vector.broadcast %761 : f32 to vector<2x128xf32>
    %763 = arith.mulf %762, %734 : vector<2x128xf32>
    %764 = arith.addf %760, %763 : vector<2x128xf32>
    %c74 = arith.constant 74 : index
    %765 = memref.load %arg1[%c74] : memref<160xf32, #tpu.memory_space<smem>>
    %766 = vector.broadcast %765 : f32 to vector<2x128xf32>
    %767 = arith.mulf %766, %626 : vector<2x128xf32>
    %c75 = arith.constant 75 : index
    %768 = memref.load %arg1[%c75] : memref<160xf32, #tpu.memory_space<smem>>
    %769 = vector.broadcast %768 : f32 to vector<2x128xf32>
    %770 = arith.mulf %769, %662 : vector<2x128xf32>
    %771 = arith.addf %767, %770 : vector<2x128xf32>
    %c76 = arith.constant 76 : index
    %772 = memref.load %arg1[%c76] : memref<160xf32, #tpu.memory_space<smem>>
    %773 = vector.broadcast %772 : f32 to vector<2x128xf32>
    %774 = arith.mulf %773, %698 : vector<2x128xf32>
    %775 = arith.addf %771, %774 : vector<2x128xf32>
    %c77 = arith.constant 77 : index
    %776 = memref.load %arg1[%c77] : memref<160xf32, #tpu.memory_space<smem>>
    %777 = vector.broadcast %776 : f32 to vector<2x128xf32>
    %778 = arith.mulf %777, %734 : vector<2x128xf32>
    %779 = arith.addf %775, %778 : vector<2x128xf32>
    %c78 = arith.constant 78 : index
    %780 = memref.load %arg1[%c78] : memref<160xf32, #tpu.memory_space<smem>>
    %781 = vector.broadcast %780 : f32 to vector<2x128xf32>
    %782 = arith.mulf %781, %626 : vector<2x128xf32>
    %c79 = arith.constant 79 : index
    %783 = memref.load %arg1[%c79] : memref<160xf32, #tpu.memory_space<smem>>
    %784 = vector.broadcast %783 : f32 to vector<2x128xf32>
    %785 = arith.mulf %784, %662 : vector<2x128xf32>
    %786 = arith.addf %782, %785 : vector<2x128xf32>
    %c80 = arith.constant 80 : index
    %787 = memref.load %arg1[%c80] : memref<160xf32, #tpu.memory_space<smem>>
    %788 = vector.broadcast %787 : f32 to vector<2x128xf32>
    %789 = arith.mulf %788, %698 : vector<2x128xf32>
    %790 = arith.addf %786, %789 : vector<2x128xf32>
    %c81 = arith.constant 81 : index
    %791 = memref.load %arg1[%c81] : memref<160xf32, #tpu.memory_space<smem>>
    %792 = vector.broadcast %791 : f32 to vector<2x128xf32>
    %793 = arith.mulf %792, %734 : vector<2x128xf32>
    %794 = arith.addf %790, %793 : vector<2x128xf32>
    %c82 = arith.constant 82 : index
    %795 = memref.load %arg1[%c82] : memref<160xf32, #tpu.memory_space<smem>>
    %796 = vector.broadcast %795 : f32 to vector<2x128xf32>
    %797 = arith.mulf %796, %626 : vector<2x128xf32>
    %c83 = arith.constant 83 : index
    %798 = memref.load %arg1[%c83] : memref<160xf32, #tpu.memory_space<smem>>
    %799 = vector.broadcast %798 : f32 to vector<2x128xf32>
    %800 = arith.mulf %799, %662 : vector<2x128xf32>
    %801 = arith.addf %797, %800 : vector<2x128xf32>
    %c84 = arith.constant 84 : index
    %802 = memref.load %arg1[%c84] : memref<160xf32, #tpu.memory_space<smem>>
    %803 = vector.broadcast %802 : f32 to vector<2x128xf32>
    %804 = arith.mulf %803, %698 : vector<2x128xf32>
    %805 = arith.addf %801, %804 : vector<2x128xf32>
    %c85 = arith.constant 85 : index
    %806 = memref.load %arg1[%c85] : memref<160xf32, #tpu.memory_space<smem>>
    %807 = vector.broadcast %806 : f32 to vector<2x128xf32>
    %808 = arith.mulf %807, %734 : vector<2x128xf32>
    %809 = arith.addf %805, %808 : vector<2x128xf32>
    %810 = vector.shape_cast %749 : vector<2x128xf32> to vector<1x2x128xf32>
    %cst_108 = arith.constant dense<0.000000e+00> : vector<1xf32>
    %811 = vector.multi_reduction <add>, %810, %cst_108 [1, 2] : vector<1x2x128xf32> to vector<1xf32>
    %812 = vector.shape_cast %811 : vector<1xf32> to vector<1x1x1xf32>
    %813 = vector.extract %812[0, 0, 0] : f32 from vector<1x1x1xf32>
    %814 = vector.broadcast %813 : f32 to vector<1x1xf32>
    %815 = arith.mulf %749, %749 : vector<2x128xf32>
    %816 = vector.shape_cast %815 : vector<2x128xf32> to vector<1x2x128xf32>
    %cst_109 = arith.constant dense<0.000000e+00> : vector<1xf32>
    %817 = vector.multi_reduction <add>, %816, %cst_109 [1, 2] : vector<1x2x128xf32> to vector<1xf32>
    %818 = vector.shape_cast %817 : vector<1xf32> to vector<1x1x1xf32>
    %819 = vector.extract %818[0, 0, 0] : f32 from vector<1x1x1xf32>
    %820 = vector.broadcast %819 : f32 to vector<1x1xf32>
    %cst_110 = arith.constant 3.906250e-03 : f32
    %821 = vector.broadcast %cst_110 : f32 to vector<1x1xf32>
    %822 = arith.mulf %814, %821 : vector<1x1xf32>
    %cst_111 = arith.constant 3.906250e-03 : f32
    %823 = vector.broadcast %cst_111 : f32 to vector<1x1xf32>
    %824 = arith.mulf %820, %823 : vector<1x1xf32>
    %825 = arith.mulf %822, %822 : vector<1x1xf32>
    %826 = arith.subf %824, %825 : vector<1x1xf32>
    %cst_112 = arith.constant 0.000000e+00 : f32
    %827 = vector.broadcast %cst_112 : f32 to vector<1x1xf32>
    %828 = arith.maximumf %826, %827 : vector<1x1xf32>
    %c150 = arith.constant 150 : index
    %829 = memref.load %arg1[%c150] : memref<160xf32, #tpu.memory_space<smem>>
    %cst_113 = arith.constant 9.99999974E-6 : f32
    %830 = vector.broadcast %cst_113 : f32 to vector<1x1xf32>
    %831 = arith.addf %828, %830 : vector<1x1xf32>
    %832 = math.rsqrt %831 : vector<1x1xf32>
    %833 = vector.broadcast %829 : f32 to vector<1x1xf32>
    %834 = arith.mulf %833, %832 : vector<1x1xf32>
    %c155 = arith.constant 155 : index
    %835 = memref.load %arg1[%c155] : memref<160xf32, #tpu.memory_space<smem>>
    %836 = arith.mulf %822, %834 : vector<1x1xf32>
    %837 = vector.broadcast %835 : f32 to vector<1x1xf32>
    %838 = arith.subf %837, %836 : vector<1x1xf32>
    %839 = vector.broadcast %834 : vector<1x1xf32> to vector<2x128xf32>
    %840 = arith.mulf %749, %839 : vector<2x128xf32>
    %841 = vector.broadcast %838 : vector<1x1xf32> to vector<2x128xf32>
    %842 = arith.addf %840, %841 : vector<2x128xf32>
    %cst_114 = arith.constant 0.00999999977 : f32
    %843 = vector.broadcast %cst_114 : f32 to vector<2x128xf32>
    %844 = arith.mulf %843, %842 : vector<2x128xf32>
    %845 = arith.maximumf %842, %844 : vector<2x128xf32>
    %846 = vector.shape_cast %764 : vector<2x128xf32> to vector<1x2x128xf32>
    %cst_115 = arith.constant dense<0.000000e+00> : vector<1xf32>
    %847 = vector.multi_reduction <add>, %846, %cst_115 [1, 2] : vector<1x2x128xf32> to vector<1xf32>
    %848 = vector.shape_cast %847 : vector<1xf32> to vector<1x1x1xf32>
    %849 = vector.extract %848[0, 0, 0] : f32 from vector<1x1x1xf32>
    %850 = vector.broadcast %849 : f32 to vector<1x1xf32>
    %851 = arith.mulf %764, %764 : vector<2x128xf32>
    %852 = vector.shape_cast %851 : vector<2x128xf32> to vector<1x2x128xf32>
    %cst_116 = arith.constant dense<0.000000e+00> : vector<1xf32>
    %853 = vector.multi_reduction <add>, %852, %cst_116 [1, 2] : vector<1x2x128xf32> to vector<1xf32>
    %854 = vector.shape_cast %853 : vector<1xf32> to vector<1x1x1xf32>
    %855 = vector.extract %854[0, 0, 0] : f32 from vector<1x1x1xf32>
    %856 = vector.broadcast %855 : f32 to vector<1x1xf32>
    %cst_117 = arith.constant 3.906250e-03 : f32
    %857 = vector.broadcast %cst_117 : f32 to vector<1x1xf32>
    %858 = arith.mulf %850, %857 : vector<1x1xf32>
    %cst_118 = arith.constant 3.906250e-03 : f32
    %859 = vector.broadcast %cst_118 : f32 to vector<1x1xf32>
    %860 = arith.mulf %856, %859 : vector<1x1xf32>
    %861 = arith.mulf %858, %858 : vector<1x1xf32>
    %862 = arith.subf %860, %861 : vector<1x1xf32>
    %cst_119 = arith.constant 0.000000e+00 : f32
    %863 = vector.broadcast %cst_119 : f32 to vector<1x1xf32>
    %864 = arith.maximumf %862, %863 : vector<1x1xf32>
    %c151 = arith.constant 151 : index
    %865 = memref.load %arg1[%c151] : memref<160xf32, #tpu.memory_space<smem>>
    %cst_120 = arith.constant 9.99999974E-6 : f32
    %866 = vector.broadcast %cst_120 : f32 to vector<1x1xf32>
    %867 = arith.addf %864, %866 : vector<1x1xf32>
    %868 = math.rsqrt %867 : vector<1x1xf32>
    %869 = vector.broadcast %865 : f32 to vector<1x1xf32>
    %870 = arith.mulf %869, %868 : vector<1x1xf32>
    %c156 = arith.constant 156 : index
    %871 = memref.load %arg1[%c156] : memref<160xf32, #tpu.memory_space<smem>>
    %872 = arith.mulf %858, %870 : vector<1x1xf32>
    %873 = vector.broadcast %871 : f32 to vector<1x1xf32>
    %874 = arith.subf %873, %872 : vector<1x1xf32>
    %875 = vector.broadcast %870 : vector<1x1xf32> to vector<2x128xf32>
    %876 = arith.mulf %764, %875 : vector<2x128xf32>
    %877 = vector.broadcast %874 : vector<1x1xf32> to vector<2x128xf32>
    %878 = arith.addf %876, %877 : vector<2x128xf32>
    %cst_121 = arith.constant 0.00999999977 : f32
    %879 = vector.broadcast %cst_121 : f32 to vector<2x128xf32>
    %880 = arith.mulf %879, %878 : vector<2x128xf32>
    %881 = arith.maximumf %878, %880 : vector<2x128xf32>
    %882 = vector.shape_cast %779 : vector<2x128xf32> to vector<1x2x128xf32>
    %cst_122 = arith.constant dense<0.000000e+00> : vector<1xf32>
    %883 = vector.multi_reduction <add>, %882, %cst_122 [1, 2] : vector<1x2x128xf32> to vector<1xf32>
    %884 = vector.shape_cast %883 : vector<1xf32> to vector<1x1x1xf32>
    %885 = vector.extract %884[0, 0, 0] : f32 from vector<1x1x1xf32>
    %886 = vector.broadcast %885 : f32 to vector<1x1xf32>
    %887 = arith.mulf %779, %779 : vector<2x128xf32>
    %888 = vector.shape_cast %887 : vector<2x128xf32> to vector<1x2x128xf32>
    %cst_123 = arith.constant dense<0.000000e+00> : vector<1xf32>
    %889 = vector.multi_reduction <add>, %888, %cst_123 [1, 2] : vector<1x2x128xf32> to vector<1xf32>
    %890 = vector.shape_cast %889 : vector<1xf32> to vector<1x1x1xf32>
    %891 = vector.extract %890[0, 0, 0] : f32 from vector<1x1x1xf32>
    %892 = vector.broadcast %891 : f32 to vector<1x1xf32>
    %cst_124 = arith.constant 3.906250e-03 : f32
    %893 = vector.broadcast %cst_124 : f32 to vector<1x1xf32>
    %894 = arith.mulf %886, %893 : vector<1x1xf32>
    %cst_125 = arith.constant 3.906250e-03 : f32
    %895 = vector.broadcast %cst_125 : f32 to vector<1x1xf32>
    %896 = arith.mulf %892, %895 : vector<1x1xf32>
    %897 = arith.mulf %894, %894 : vector<1x1xf32>
    %898 = arith.subf %896, %897 : vector<1x1xf32>
    %cst_126 = arith.constant 0.000000e+00 : f32
    %899 = vector.broadcast %cst_126 : f32 to vector<1x1xf32>
    %900 = arith.maximumf %898, %899 : vector<1x1xf32>
    %c152 = arith.constant 152 : index
    %901 = memref.load %arg1[%c152] : memref<160xf32, #tpu.memory_space<smem>>
    %cst_127 = arith.constant 9.99999974E-6 : f32
    %902 = vector.broadcast %cst_127 : f32 to vector<1x1xf32>
    %903 = arith.addf %900, %902 : vector<1x1xf32>
    %904 = math.rsqrt %903 : vector<1x1xf32>
    %905 = vector.broadcast %901 : f32 to vector<1x1xf32>
    %906 = arith.mulf %905, %904 : vector<1x1xf32>
    %c157 = arith.constant 157 : index
    %907 = memref.load %arg1[%c157] : memref<160xf32, #tpu.memory_space<smem>>
    %908 = arith.mulf %894, %906 : vector<1x1xf32>
    %909 = vector.broadcast %907 : f32 to vector<1x1xf32>
    %910 = arith.subf %909, %908 : vector<1x1xf32>
    %911 = vector.broadcast %906 : vector<1x1xf32> to vector<2x128xf32>
    %912 = arith.mulf %779, %911 : vector<2x128xf32>
    %913 = vector.broadcast %910 : vector<1x1xf32> to vector<2x128xf32>
    %914 = arith.addf %912, %913 : vector<2x128xf32>
    %cst_128 = arith.constant 0.00999999977 : f32
    %915 = vector.broadcast %cst_128 : f32 to vector<2x128xf32>
    %916 = arith.mulf %915, %914 : vector<2x128xf32>
    %917 = arith.maximumf %914, %916 : vector<2x128xf32>
    %918 = vector.shape_cast %794 : vector<2x128xf32> to vector<1x2x128xf32>
    %cst_129 = arith.constant dense<0.000000e+00> : vector<1xf32>
    %919 = vector.multi_reduction <add>, %918, %cst_129 [1, 2] : vector<1x2x128xf32> to vector<1xf32>
    %920 = vector.shape_cast %919 : vector<1xf32> to vector<1x1x1xf32>
    %921 = vector.extract %920[0, 0, 0] : f32 from vector<1x1x1xf32>
    %922 = vector.broadcast %921 : f32 to vector<1x1xf32>
    %923 = arith.mulf %794, %794 : vector<2x128xf32>
    %924 = vector.shape_cast %923 : vector<2x128xf32> to vector<1x2x128xf32>
    %cst_130 = arith.constant dense<0.000000e+00> : vector<1xf32>
    %925 = vector.multi_reduction <add>, %924, %cst_130 [1, 2] : vector<1x2x128xf32> to vector<1xf32>
    %926 = vector.shape_cast %925 : vector<1xf32> to vector<1x1x1xf32>
    %927 = vector.extract %926[0, 0, 0] : f32 from vector<1x1x1xf32>
    %928 = vector.broadcast %927 : f32 to vector<1x1xf32>
    %cst_131 = arith.constant 3.906250e-03 : f32
    %929 = vector.broadcast %cst_131 : f32 to vector<1x1xf32>
    %930 = arith.mulf %922, %929 : vector<1x1xf32>
    %cst_132 = arith.constant 3.906250e-03 : f32
    %931 = vector.broadcast %cst_132 : f32 to vector<1x1xf32>
    %932 = arith.mulf %928, %931 : vector<1x1xf32>
    %933 = arith.mulf %930, %930 : vector<1x1xf32>
    %934 = arith.subf %932, %933 : vector<1x1xf32>
    %cst_133 = arith.constant 0.000000e+00 : f32
    %935 = vector.broadcast %cst_133 : f32 to vector<1x1xf32>
    %936 = arith.maximumf %934, %935 : vector<1x1xf32>
    %c153 = arith.constant 153 : index
    %937 = memref.load %arg1[%c153] : memref<160xf32, #tpu.memory_space<smem>>
    %cst_134 = arith.constant 9.99999974E-6 : f32
    %938 = vector.broadcast %cst_134 : f32 to vector<1x1xf32>
    %939 = arith.addf %936, %938 : vector<1x1xf32>
    %940 = math.rsqrt %939 : vector<1x1xf32>
    %941 = vector.broadcast %937 : f32 to vector<1x1xf32>
    %942 = arith.mulf %941, %940 : vector<1x1xf32>
    %c158 = arith.constant 158 : index
    %943 = memref.load %arg1[%c158] : memref<160xf32, #tpu.memory_space<smem>>
    %944 = arith.mulf %930, %942 : vector<1x1xf32>
    %945 = vector.broadcast %943 : f32 to vector<1x1xf32>
    %946 = arith.subf %945, %944 : vector<1x1xf32>
    %947 = vector.broadcast %942 : vector<1x1xf32> to vector<2x128xf32>
    %948 = arith.mulf %794, %947 : vector<2x128xf32>
    %949 = vector.broadcast %946 : vector<1x1xf32> to vector<2x128xf32>
    %950 = arith.addf %948, %949 : vector<2x128xf32>
    %cst_135 = arith.constant 0.00999999977 : f32
    %951 = vector.broadcast %cst_135 : f32 to vector<2x128xf32>
    %952 = arith.mulf %951, %950 : vector<2x128xf32>
    %953 = arith.maximumf %950, %952 : vector<2x128xf32>
    %954 = vector.shape_cast %809 : vector<2x128xf32> to vector<1x2x128xf32>
    %cst_136 = arith.constant dense<0.000000e+00> : vector<1xf32>
    %955 = vector.multi_reduction <add>, %954, %cst_136 [1, 2] : vector<1x2x128xf32> to vector<1xf32>
    %956 = vector.shape_cast %955 : vector<1xf32> to vector<1x1x1xf32>
    %957 = vector.extract %956[0, 0, 0] : f32 from vector<1x1x1xf32>
    %958 = vector.broadcast %957 : f32 to vector<1x1xf32>
    %959 = arith.mulf %809, %809 : vector<2x128xf32>
    %960 = vector.shape_cast %959 : vector<2x128xf32> to vector<1x2x128xf32>
    %cst_137 = arith.constant dense<0.000000e+00> : vector<1xf32>
    %961 = vector.multi_reduction <add>, %960, %cst_137 [1, 2] : vector<1x2x128xf32> to vector<1xf32>
    %962 = vector.shape_cast %961 : vector<1xf32> to vector<1x1x1xf32>
    %963 = vector.extract %962[0, 0, 0] : f32 from vector<1x1x1xf32>
    %964 = vector.broadcast %963 : f32 to vector<1x1xf32>
    %cst_138 = arith.constant 3.906250e-03 : f32
    %965 = vector.broadcast %cst_138 : f32 to vector<1x1xf32>
    %966 = arith.mulf %958, %965 : vector<1x1xf32>
    %cst_139 = arith.constant 3.906250e-03 : f32
    %967 = vector.broadcast %cst_139 : f32 to vector<1x1xf32>
    %968 = arith.mulf %964, %967 : vector<1x1xf32>
    %969 = arith.mulf %966, %966 : vector<1x1xf32>
    %970 = arith.subf %968, %969 : vector<1x1xf32>
    %cst_140 = arith.constant 0.000000e+00 : f32
    %971 = vector.broadcast %cst_140 : f32 to vector<1x1xf32>
    %972 = arith.maximumf %970, %971 : vector<1x1xf32>
    %c154 = arith.constant 154 : index
    %973 = memref.load %arg1[%c154] : memref<160xf32, #tpu.memory_space<smem>>
    %cst_141 = arith.constant 9.99999974E-6 : f32
    %974 = vector.broadcast %cst_141 : f32 to vector<1x1xf32>
    %975 = arith.addf %972, %974 : vector<1x1xf32>
    %976 = math.rsqrt %975 : vector<1x1xf32>
    %977 = vector.broadcast %973 : f32 to vector<1x1xf32>
    %978 = arith.mulf %977, %976 : vector<1x1xf32>
    %c159 = arith.constant 159 : index
    %979 = memref.load %arg1[%c159] : memref<160xf32, #tpu.memory_space<smem>>
    %980 = arith.mulf %966, %978 : vector<1x1xf32>
    %981 = vector.broadcast %979 : f32 to vector<1x1xf32>
    %982 = arith.subf %981, %980 : vector<1x1xf32>
    %983 = vector.broadcast %978 : vector<1x1xf32> to vector<2x128xf32>
    %984 = arith.mulf %809, %983 : vector<2x128xf32>
    %985 = vector.broadcast %982 : vector<1x1xf32> to vector<2x128xf32>
    %986 = arith.addf %984, %985 : vector<2x128xf32>
    %cst_142 = arith.constant 0.00999999977 : f32
    %987 = vector.broadcast %cst_142 : f32 to vector<2x128xf32>
    %988 = arith.mulf %987, %986 : vector<2x128xf32>
    %989 = arith.maximumf %986, %988 : vector<2x128xf32>
    %c86 = arith.constant 86 : index
    %990 = memref.load %arg1[%c86] : memref<160xf32, #tpu.memory_space<smem>>
    %991 = vector.broadcast %990 : f32 to vector<2x128xf32>
    %992 = arith.mulf %991, %845 : vector<2x128xf32>
    %c87 = arith.constant 87 : index
    %993 = memref.load %arg1[%c87] : memref<160xf32, #tpu.memory_space<smem>>
    %994 = vector.broadcast %993 : f32 to vector<2x128xf32>
    %995 = arith.mulf %994, %881 : vector<2x128xf32>
    %996 = arith.addf %992, %995 : vector<2x128xf32>
    %c88 = arith.constant 88 : index
    %997 = memref.load %arg1[%c88] : memref<160xf32, #tpu.memory_space<smem>>
    %998 = vector.broadcast %997 : f32 to vector<2x128xf32>
    %999 = arith.mulf %998, %917 : vector<2x128xf32>
    %1000 = arith.addf %996, %999 : vector<2x128xf32>
    %c89 = arith.constant 89 : index
    %1001 = memref.load %arg1[%c89] : memref<160xf32, #tpu.memory_space<smem>>
    %1002 = vector.broadcast %1001 : f32 to vector<2x128xf32>
    %1003 = arith.mulf %1002, %953 : vector<2x128xf32>
    %1004 = arith.addf %1000, %1003 : vector<2x128xf32>
    %c90 = arith.constant 90 : index
    %1005 = memref.load %arg1[%c90] : memref<160xf32, #tpu.memory_space<smem>>
    %1006 = vector.broadcast %1005 : f32 to vector<2x128xf32>
    %1007 = arith.mulf %1006, %989 : vector<2x128xf32>
    %1008 = arith.addf %1004, %1007 : vector<2x128xf32>
    %c91 = arith.constant 91 : index
    %1009 = memref.load %arg1[%c91] : memref<160xf32, #tpu.memory_space<smem>>
    %1010 = vector.broadcast %1009 : f32 to vector<2x128xf32>
    %1011 = arith.mulf %1010, %845 : vector<2x128xf32>
    %c92 = arith.constant 92 : index
    %1012 = memref.load %arg1[%c92] : memref<160xf32, #tpu.memory_space<smem>>
    %1013 = vector.broadcast %1012 : f32 to vector<2x128xf32>
    %1014 = arith.mulf %1013, %881 : vector<2x128xf32>
    %1015 = arith.addf %1011, %1014 : vector<2x128xf32>
    %c93 = arith.constant 93 : index
    %1016 = memref.load %arg1[%c93] : memref<160xf32, #tpu.memory_space<smem>>
    %1017 = vector.broadcast %1016 : f32 to vector<2x128xf32>
    %1018 = arith.mulf %1017, %917 : vector<2x128xf32>
    %1019 = arith.addf %1015, %1018 : vector<2x128xf32>
    %c94 = arith.constant 94 : index
    %1020 = memref.load %arg1[%c94] : memref<160xf32, #tpu.memory_space<smem>>
    %1021 = vector.broadcast %1020 : f32 to vector<2x128xf32>
    %1022 = arith.mulf %1021, %953 : vector<2x128xf32>
    %1023 = arith.addf %1019, %1022 : vector<2x128xf32>
    %c95 = arith.constant 95 : index
    %1024 = memref.load %arg1[%c95] : memref<160xf32, #tpu.memory_space<smem>>
    %1025 = vector.broadcast %1024 : f32 to vector<2x128xf32>
    %1026 = arith.mulf %1025, %989 : vector<2x128xf32>
    %1027 = arith.addf %1023, %1026 : vector<2x128xf32>
    %c96 = arith.constant 96 : index
    %1028 = memref.load %arg1[%c96] : memref<160xf32, #tpu.memory_space<smem>>
    %1029 = vector.broadcast %1028 : f32 to vector<2x128xf32>
    %1030 = arith.mulf %1029, %845 : vector<2x128xf32>
    %c97 = arith.constant 97 : index
    %1031 = memref.load %arg1[%c97] : memref<160xf32, #tpu.memory_space<smem>>
    %1032 = vector.broadcast %1031 : f32 to vector<2x128xf32>
    %1033 = arith.mulf %1032, %881 : vector<2x128xf32>
    %1034 = arith.addf %1030, %1033 : vector<2x128xf32>
    %c98 = arith.constant 98 : index
    %1035 = memref.load %arg1[%c98] : memref<160xf32, #tpu.memory_space<smem>>
    %1036 = vector.broadcast %1035 : f32 to vector<2x128xf32>
    %1037 = arith.mulf %1036, %917 : vector<2x128xf32>
    %1038 = arith.addf %1034, %1037 : vector<2x128xf32>
    %c99 = arith.constant 99 : index
    %1039 = memref.load %arg1[%c99] : memref<160xf32, #tpu.memory_space<smem>>
    %1040 = vector.broadcast %1039 : f32 to vector<2x128xf32>
    %1041 = arith.mulf %1040, %953 : vector<2x128xf32>
    %1042 = arith.addf %1038, %1041 : vector<2x128xf32>
    %c100 = arith.constant 100 : index
    %1043 = memref.load %arg1[%c100] : memref<160xf32, #tpu.memory_space<smem>>
    %1044 = vector.broadcast %1043 : f32 to vector<2x128xf32>
    %1045 = arith.mulf %1044, %989 : vector<2x128xf32>
    %1046 = arith.addf %1042, %1045 : vector<2x128xf32>
    %c101 = arith.constant 101 : index
    %1047 = memref.load %arg1[%c101] : memref<160xf32, #tpu.memory_space<smem>>
    %1048 = vector.broadcast %1047 : f32 to vector<2x128xf32>
    %1049 = arith.mulf %1048, %845 : vector<2x128xf32>
    %c102 = arith.constant 102 : index
    %1050 = memref.load %arg1[%c102] : memref<160xf32, #tpu.memory_space<smem>>
    %1051 = vector.broadcast %1050 : f32 to vector<2x128xf32>
    %1052 = arith.mulf %1051, %881 : vector<2x128xf32>
    %1053 = arith.addf %1049, %1052 : vector<2x128xf32>
    %c103 = arith.constant 103 : index
    %1054 = memref.load %arg1[%c103] : memref<160xf32, #tpu.memory_space<smem>>
    %1055 = vector.broadcast %1054 : f32 to vector<2x128xf32>
    %1056 = arith.mulf %1055, %917 : vector<2x128xf32>
    %1057 = arith.addf %1053, %1056 : vector<2x128xf32>
    %c104 = arith.constant 104 : index
    %1058 = memref.load %arg1[%c104] : memref<160xf32, #tpu.memory_space<smem>>
    %1059 = vector.broadcast %1058 : f32 to vector<2x128xf32>
    %1060 = arith.mulf %1059, %953 : vector<2x128xf32>
    %1061 = arith.addf %1057, %1060 : vector<2x128xf32>
    %c105 = arith.constant 105 : index
    %1062 = memref.load %arg1[%c105] : memref<160xf32, #tpu.memory_space<smem>>
    %1063 = vector.broadcast %1062 : f32 to vector<2x128xf32>
    %1064 = arith.mulf %1063, %989 : vector<2x128xf32>
    %1065 = arith.addf %1061, %1064 : vector<2x128xf32>
    %c106 = arith.constant 106 : index
    %1066 = memref.load %arg1[%c106] : memref<160xf32, #tpu.memory_space<smem>>
    %1067 = vector.broadcast %1066 : f32 to vector<2x128xf32>
    %1068 = arith.mulf %1067, %845 : vector<2x128xf32>
    %c107 = arith.constant 107 : index
    %1069 = memref.load %arg1[%c107] : memref<160xf32, #tpu.memory_space<smem>>
    %1070 = vector.broadcast %1069 : f32 to vector<2x128xf32>
    %1071 = arith.mulf %1070, %881 : vector<2x128xf32>
    %1072 = arith.addf %1068, %1071 : vector<2x128xf32>
    %c108 = arith.constant 108 : index
    %1073 = memref.load %arg1[%c108] : memref<160xf32, #tpu.memory_space<smem>>
    %1074 = vector.broadcast %1073 : f32 to vector<2x128xf32>
    %1075 = arith.mulf %1074, %917 : vector<2x128xf32>
    %1076 = arith.addf %1072, %1075 : vector<2x128xf32>
    %c109 = arith.constant 109 : index
    %1077 = memref.load %arg1[%c109] : memref<160xf32, #tpu.memory_space<smem>>
    %1078 = vector.broadcast %1077 : f32 to vector<2x128xf32>
    %1079 = arith.mulf %1078, %953 : vector<2x128xf32>
    %1080 = arith.addf %1076, %1079 : vector<2x128xf32>
    %c110 = arith.constant 110 : index
    %1081 = memref.load %arg1[%c110] : memref<160xf32, #tpu.memory_space<smem>>
    %1082 = vector.broadcast %1081 : f32 to vector<2x128xf32>
    %1083 = arith.mulf %1082, %989 : vector<2x128xf32>
    %1084 = arith.addf %1080, %1083 : vector<2x128xf32>
    %c111 = arith.constant 111 : index
    %1085 = memref.load %arg1[%c111] : memref<160xf32, #tpu.memory_space<smem>>
    %1086 = vector.broadcast %1085 : f32 to vector<2x128xf32>
    %1087 = arith.mulf %1086, %845 : vector<2x128xf32>
    %c112 = arith.constant 112 : index
    %1088 = memref.load %arg1[%c112] : memref<160xf32, #tpu.memory_space<smem>>
    %1089 = vector.broadcast %1088 : f32 to vector<2x128xf32>
    %1090 = arith.mulf %1089, %881 : vector<2x128xf32>
    %1091 = arith.addf %1087, %1090 : vector<2x128xf32>
    %c113 = arith.constant 113 : index
    %1092 = memref.load %arg1[%c113] : memref<160xf32, #tpu.memory_space<smem>>
    %1093 = vector.broadcast %1092 : f32 to vector<2x128xf32>
    %1094 = arith.mulf %1093, %917 : vector<2x128xf32>
    %1095 = arith.addf %1091, %1094 : vector<2x128xf32>
    %c114 = arith.constant 114 : index
    %1096 = memref.load %arg1[%c114] : memref<160xf32, #tpu.memory_space<smem>>
    %1097 = vector.broadcast %1096 : f32 to vector<2x128xf32>
    %1098 = arith.mulf %1097, %953 : vector<2x128xf32>
    %1099 = arith.addf %1095, %1098 : vector<2x128xf32>
    %c115 = arith.constant 115 : index
    %1100 = memref.load %arg1[%c115] : memref<160xf32, #tpu.memory_space<smem>>
    %1101 = vector.broadcast %1100 : f32 to vector<2x128xf32>
    %1102 = arith.mulf %1101, %989 : vector<2x128xf32>
    %1103 = arith.addf %1099, %1102 : vector<2x128xf32>
    %c118 = arith.constant 118 : index
    %1104 = memref.load %arg1[%c118] : memref<160xf32, #tpu.memory_space<smem>>
    %1105 = vector.broadcast %1104 : f32 to vector<2x128xf32>
    %1106 = arith.addf %1008, %1105 : vector<2x128xf32>
    %c0_143 = arith.constant 0 : index
    %c0_144 = arith.constant 0 : index
    %c0_145 = arith.constant 0 : index
    %1107 = vector.load %arg2[%c0_143, %c0_144, %c0_145] : memref<6x2x128xf32, #tpu.memory_space<vmem>>, vector<1x2x128xf32>
    %1108 = vector.shape_cast %1107 : vector<1x2x128xf32> to vector<2x128xf32>
    %1109 = vector.shape_cast %1106 : vector<2x128xf32> to vector<1x2x128xf32>
    tpu.vector_store %arg2[%c0_143, %c0_144, %c0_145], %1109 {strides = array<i32>} : memref<6x2x128xf32, #tpu.memory_space<vmem>>, vector<1x2x128xf32>,
    %c119 = arith.constant 119 : index
    %1110 = memref.load %arg1[%c119] : memref<160xf32, #tpu.memory_space<smem>>
    %1111 = vector.broadcast %1110 : f32 to vector<2x128xf32>
    %1112 = arith.addf %1027, %1111 : vector<2x128xf32>
    %c1_146 = arith.constant 1 : index
    %c0_147 = arith.constant 0 : index
    %c0_148 = arith.constant 0 : index
    %1113 = vector.load %arg2[%c1_146, %c0_147, %c0_148] : memref<6x2x128xf32, #tpu.memory_space<vmem>>, vector<1x2x128xf32>
    %1114 = vector.shape_cast %1113 : vector<1x2x128xf32> to vector<2x128xf32>
    %1115 = vector.shape_cast %1112 : vector<2x128xf32> to vector<1x2x128xf32>
    tpu.vector_store %arg2[%c1_146, %c0_147, %c0_148], %1115 {strides = array<i32>} : memref<6x2x128xf32, #tpu.memory_space<vmem>>, vector<1x2x128xf32>,
    %c120 = arith.constant 120 : index
    %1116 = memref.load %arg1[%c120] : memref<160xf32, #tpu.memory_space<smem>>
    %1117 = vector.broadcast %1116 : f32 to vector<2x128xf32>
    %1118 = arith.addf %1046, %1117 : vector<2x128xf32>
    %c2_149 = arith.constant 2 : index
    %c0_150 = arith.constant 0 : index
    %c0_151 = arith.constant 0 : index
    %1119 = vector.load %arg2[%c2_149, %c0_150, %c0_151] : memref<6x2x128xf32, #tpu.memory_space<vmem>>, vector<1x2x128xf32>
    %1120 = vector.shape_cast %1119 : vector<1x2x128xf32> to vector<2x128xf32>
    %1121 = vector.shape_cast %1118 : vector<2x128xf32> to vector<1x2x128xf32>
    tpu.vector_store %arg2[%c2_149, %c0_150, %c0_151], %1121 {strides = array<i32>} : memref<6x2x128xf32, #tpu.memory_space<vmem>>, vector<1x2x128xf32>,
    %c121 = arith.constant 121 : index
    %1122 = memref.load %arg1[%c121] : memref<160xf32, #tpu.memory_space<smem>>
    %1123 = vector.broadcast %1122 : f32 to vector<2x128xf32>
    %1124 = arith.addf %1065, %1123 : vector<2x128xf32>
    %c3_152 = arith.constant 3 : index
    %c0_153 = arith.constant 0 : index
    %c0_154 = arith.constant 0 : index
    %1125 = vector.load %arg2[%c3_152, %c0_153, %c0_154] : memref<6x2x128xf32, #tpu.memory_space<vmem>>, vector<1x2x128xf32>
    %1126 = vector.shape_cast %1125 : vector<1x2x128xf32> to vector<2x128xf32>
    %1127 = vector.shape_cast %1124 : vector<2x128xf32> to vector<1x2x128xf32>
    tpu.vector_store %arg2[%c3_152, %c0_153, %c0_154], %1127 {strides = array<i32>} : memref<6x2x128xf32, #tpu.memory_space<vmem>>, vector<1x2x128xf32>,
    %c122 = arith.constant 122 : index
    %1128 = memref.load %arg1[%c122] : memref<160xf32, #tpu.memory_space<smem>>
    %1129 = vector.broadcast %1128 : f32 to vector<2x128xf32>
    %1130 = arith.addf %1084, %1129 : vector<2x128xf32>
    %c4_155 = arith.constant 4 : index
    %c0_156 = arith.constant 0 : index
    %c0_157 = arith.constant 0 : index
    %1131 = vector.load %arg2[%c4_155, %c0_156, %c0_157] : memref<6x2x128xf32, #tpu.memory_space<vmem>>, vector<1x2x128xf32>
    %1132 = vector.shape_cast %1131 : vector<1x2x128xf32> to vector<2x128xf32>
    %1133 = vector.shape_cast %1130 : vector<2x128xf32> to vector<1x2x128xf32>
    tpu.vector_store %arg2[%c4_155, %c0_156, %c0_157], %1133 {strides = array<i32>} : memref<6x2x128xf32, #tpu.memory_space<vmem>>, vector<1x2x128xf32>,
    %c123 = arith.constant 123 : index
    %1134 = memref.load %arg1[%c123] : memref<160xf32, #tpu.memory_space<smem>>
    %1135 = vector.broadcast %1134 : f32 to vector<2x128xf32>
    %1136 = arith.addf %1103, %1135 : vector<2x128xf32>
    %c5_158 = arith.constant 5 : index
    %c0_159 = arith.constant 0 : index
    %c0_160 = arith.constant 0 : index
    %1137 = vector.load %arg2[%c5_158, %c0_159, %c0_160] : memref<6x2x128xf32, #tpu.memory_space<vmem>>, vector<1x2x128xf32>
    %1138 = vector.shape_cast %1137 : vector<1x2x128xf32> to vector<2x128xf32>
    %1139 = vector.shape_cast %1136 : vector<2x128xf32> to vector<1x2x128xf32>
    tpu.vector_store %arg2[%c5_158, %c0_159, %c0_160], %1139 {strides = array<i32>} : memref<6x2x128xf32, #tpu.memory_space<vmem>>, vector<1x2x128xf32>,
    return
  }
}

</mosaic_0001>

<llo_original>
// kernel: tpu_custom_call.1
$region0: #{tpu_custom_call.1}
  #allocation0 [shape = 'u32[]', space=smem, size = 0x4, offset = 0x4, fixed_abs, tag = 'smem constant byte address 0x4 - core index']
  #allocation1 [shape = 'u32[72,128]{1,0:T(1,128)}', space=vmem, size = 0x9000, scoped, tag = 'internal scratch']
  %s0 = inlined_call_operand.hbm [shape: f32[6,2,128], index: 0, kind: input, shape index: {}]
  %s1 = inlined_call_operand.hbm [shape: f32[160], index: 1, kind: input, shape index: {}]
  %s2 = inlined_call_operand.hbm [shape: f32[6,2,128], index: 2, kind: output, shape index: {}]
  %s3 = sld [smem:[#allocation0]]
  $region26: #{tpu_custom_call.1} parent=0
    _
  %s5 = ssub.s32 1, %s3
  %s6 = scalar_select 0, %s5, %s3
  $region1: #{tpu_custom_call.1} parent=0
    #allocation2 [shape = 'u8[6144]{0}', space=vmem, size = 0x1800, scoped, tag = 'input window, operand 0, single buffered']
    #allocation3 [shape = 's32[1]{0}', space=sflag, size = 0x4, scoped, tag = 'scoped memory for tpu_custom_call.1']
    #allocation4 [shape = 's32[1]{0}', space=sflag, size = 0x4, scoped, tag = 'scoped memory for tpu_custom_call.1']
    #allocation5 [shape = 's32[1]{0}', space=sflag, size = 0x4, scoped, tag = 'scoped memory for tpu_custom_call.1']
    #allocation6 [shape = 'u8[1024]{0}', space=smem, size = 0x400, scoped, tag = 'input window, operand 1, single buffered']
    #allocation7 [shape = 'u8[6144]{0}', space=vmem, size = 0x1800, scoped, tag = 'output window, operand 0, single buffered']
    %7 = vsyncpa [#allocation3], 0
    %8 = vsyncpa [#allocation5], 0
    %9 = vsyncpa [#allocation4], 0
    // Predicated region
    $region2: #{tpu_custom_call.1} parent=1 // pred_check
      _
    $region3: #{tpu_custom_call.1} parent=1 // pred_check_branch
      %11 = sbr.rel (0) target = $region5
    $region4: #{tpu_custom_call.1} parent=1 // pred_region
      %13 = vsyncadd [#allocation3], 0
      %s14 = sshll.u32 %s0, 4
      %s15 = int_to_ptr.hbm [resolvable:$true] %s14
      %s16 = sshll.u32 [#allocation2], 4
      %s17 = int_to_ptr.vmem [resolvable:$true] %s16
      %22 = dma.hbm_to_vmem [thread:$0]  %s15, 192, %s17, [#allocation3], 32, 32, 2
    $region5: #{tpu_custom_call.1} parent=1 // pred_fallthru
      _
    // Predicated region
    $region6: #{tpu_custom_call.1} parent=1 // pred_check
      _
    $region7: #{tpu_custom_call.1} parent=1 // pred_check_branch
      %24 = sbr.rel (0) target = $region9
    $region8: #{tpu_custom_call.1} parent=1 // pred_region
      %26 = vsyncadd [#allocation5], 0
      %s28 = sshll.u32 %s1, 4
      %s29 = int_to_ptr.hbm [resolvable:$true] %s28
      %31 = dma.hbm_to_smem %s29, 32, [#allocation6], [#allocation5]
    $region9: #{tpu_custom_call.1} parent=1 // pred_fallthru
      _
    // Predicated region
    $region10: #{tpu_custom_call.1} parent=1 // pred_check
      _
    $region11: #{tpu_custom_call.1} parent=1 // pred_check_branch
      %33 = sbr.rel (0) target = $region13
    $region12: #{tpu_custom_call.1} parent=1 // pred_region
      %35 = dma.done [#allocation3], 192
    $region13: #{tpu_custom_call.1} parent=1 // pred_fallthru
      _
    // Predicated region
    $region14: #{tpu_custom_call.1} parent=1 // pred_check
      _
    $region15: #{tpu_custom_call.1} parent=1 // pred_check_branch
      %37 = sbr.rel (0) target = $region17
    $region16: #{tpu_custom_call.1} parent=1 // pred_region
      %39 = dma.done [#allocation5], 32
    $region17: #{tpu_custom_call.1} parent=1 // pred_fallthru
      _
    %40 = sfence
    %v41 = vld [vmem:[#allocation2] sm:$0x3]
    %s42 = scalar_lea.vmem [#allocation2], 2
    %v43 = vld [vmem:[%s42] sm:$0x3]
    %s44 = scalar_lea.vmem [#allocation2], 4
    %v45 = vld [vmem:[%s44] sm:$0x3]
    %s46 = scalar_lea.vmem [#allocation2], 6
    %v47 = vld [vmem:[%s46] sm:$0x3]
    %s48 = scalar_lea.vmem [#allocation2], 8
    %v49 = vld [vmem:[%s48] sm:$0x3]
    %s50 = scalar_lea.vmem [#allocation2], 10
    %v51 = vld [vmem:[%s50] sm:$0x3]
    %s52 = sld [smem:[#allocation6]]
    %v53 = vstv %s52
    %v54 = vmul.f32 %v53, %v41
    %s55 = sld [smem:[#allocation6 + $0x1]]
    %v56 = vstv %s55
    %v57 = vmul.f32 %v56, %v43
    %v58 = vadd.f32 %v54, %v57
    %s59 = sld [smem:[#allocation6 + $0x2]]
    %v60 = vstv %s59
    %v61 = vmul.f32 %v60, %v45
    %v62 = vadd.f32 %v58, %v61
    %s63 = sld [smem:[#allocation6 + $0x3]]
    %v64 = vstv %s63
    %v65 = vmul.f32 %v64, %v47
    %v66 = vadd.f32 %v62, %v65
    %s67 = sld [smem:[#allocation6 + $0x4]]
    %v68 = vstv %s67
    %v69 = vmul.f32 %v68, %v49
    %v70 = vadd.f32 %v66, %v69
    %s71 = sld [smem:[#allocation6 + $0x5]]
    %v72 = vstv %s71
    %v73 = vmul.f32 %v72, %v51
    %v74 = vadd.f32 %v70, %v73
    %s75 = sld [smem:[#allocation6 + $0x6]]
    %v76 = vstv %s75
    %v77 = vmul.f32 %v76, %v41
    %s78 = sld [smem:[#allocation6 + $0x7]]
    %v79 = vstv %s78
    %v80 = vmul.f32 %v79, %v43
    %v81 = vadd.f32 %v77, %v80
    %s82 = sld [smem:[#allocation6 + $0x8]]
    %v83 = vstv %s82
    %v84 = vmul.f32 %v83, %v45
    %v85 = vadd.f32 %v81, %v84
    %s86 = sld [smem:[#allocation6 + $0x9]]
    %v87 = vstv %s86
    %v88 = vmul.f32 %v87, %v47
    %v89 = vadd.f32 %v85, %v88
    %s90 = sld [smem:[#allocation6 + $0xa]]
    %v91 = vstv %s90
    %v92 = vmul.f32 %v91, %v49
    %v93 = vadd.f32 %v89, %v92
    %s94 = sld [smem:[#allocation6 + $0xb]]
    %v95 = vstv %s94
    %v96 = vmul.f32 %v95, %v51
    %v97 = vadd.f32 %v93, %v96
    %s98 = sld [smem:[#allocation6 + $0xc]]
    %v99 = vstv %s98
    %v100 = vmul.f32 %v99, %v41
    %s101 = sld [smem:[#allocation6 + $0xd]]
    %v102 = vstv %s101
    %v103 = vmul.f32 %v102, %v43
    %v104 = vadd.f32 %v100, %v103
    %s105 = sld [smem:[#allocation6 + $0xe]]
    %v106 = vstv %s105
    %v107 = vmul.f32 %v106, %v45
    %v108 = vadd.f32 %v104, %v107
    %s109 = sld [smem:[#allocation6 + $0xf]]
    %v110 = vstv %s109
    %v111 = vmul.f32 %v110, %v47
    %v112 = vadd.f32 %v108, %v111
    %s113 = sld [smem:[#allocation6 + $0x10]]
    %v114 = vstv %s113
    %v115 = vmul.f32 %v114, %v49
    %v116 = vadd.f32 %v112, %v115
    %s117 = sld [smem:[#allocation6 + $0x11]]
    %v118 = vstv %s117
    %v119 = vmul.f32 %v118, %v51
    %v120 = vadd.f32 %v116, %v119
    %s121 = sld [smem:[#allocation6 + $0x12]]
    %v122 = vstv %s121
    %v123 = vmul.f32 %v122, %v41
    %s124 = sld [smem:[#allocation6 + $0x13]]
    %v125 = vstv %s124
    %v126 = vmul.f32 %v125, %v43
    %v127 = vadd.f32 %v123, %v126
    %s128 = sld [smem:[#allocation6 + $0x14]]
    %v129 = vstv %s128
    %v130 = vmul.f32 %v129, %v45
    %v131 = vadd.f32 %v127, %v130
    %s132 = sld [smem:[#allocation6 + $0x15]]
    %v133 = vstv %s132
    %v134 = vmul.f32 %v133, %v47
    %v135 = vadd.f32 %v131, %v134
    %s136 = sld [smem:[#allocation6 + $0x16]]
    %v137 = vstv %s136
    %v138 = vmul.f32 %v137, %v49
    %v139 = vadd.f32 %v135, %v138
    %s140 = sld [smem:[#allocation6 + $0x17]]
    %v141 = vstv %s140
    %v142 = vmul.f32 %v141, %v51
    %v143 = vadd.f32 %v139, %v142
    %s144 = sld [smem:[#allocation6 + $0x18]]
    %v145 = vstv %s144
    %v146 = vmul.f32 %v145, %v41
    %s147 = sld [smem:[#allocation6 + $0x19]]
    %v148 = vstv %s147
    %v149 = vmul.f32 %v148, %v43
    %v150 = vadd.f32 %v146, %v149
    %s151 = sld [smem:[#allocation6 + $0x1a]]
    %v152 = vstv %s151
    %v153 = vmul.f32 %v152, %v45
    %v154 = vadd.f32 %v150, %v153
    %s155 = sld [smem:[#allocation6 + $0x1b]]
    %v156 = vstv %s155
    %v157 = vmul.f32 %v156, %v47
    %v158 = vadd.f32 %v154, %v157
    %s159 = sld [smem:[#allocation6 + $0x1c]]
    %v160 = vstv %s159
    %v161 = vmul.f32 %v160, %v49
    %v162 = vadd.f32 %v158, %v161
    %s163 = sld [smem:[#allocation6 + $0x1d]]
    %v164 = vstv %s163
    %v165 = vmul.f32 %v164, %v51
    %v166 = vadd.f32 %v162, %v165
    %vm167 = vcmask 1041408
    %v168 = vsel %vm167, %v74, 0.0
    %169 = vadd.xlane.f32.xlu0 %v168
    %v170 = vpop.xlane.xlu0 %169
    %v171 = vrot.slane %v170, 4
    %v172 = vadd.f32 %v170, %v171
    %v173 = vrot.slane %v172, 2
    %v174 = vadd.f32 %v172, %v173
    %v175 = vrot.slane %v174, 1
    %v176 = vadd.f32 %v174, %v175
    %s177 = vtos %v176
    %v178 = vstv %s177
    %v179 = vmul.f32 %v74, %v74
    %v180 = vsel %vm167, %v179, 0.0
    %181 = vadd.xlane.f32.xlu0 %v180
    %v182 = vpop.xlane.xlu0 %181
    %v183 = vrot.slane %v182, 4
    %v184 = vadd.f32 %v182, %v183
    %v185 = vrot.slane %v184, 2
    %v186 = vadd.f32 %v184, %v185
    %v187 = vrot.slane %v186, 1
    %v188 = vadd.f32 %v186, %v187
    %s189 = vtos %v188
    %v190 = vstv %s189
    %v191 = vmul.f32 %v178, 0.00390625
    %v192 = vmul.f32 %v190, 0.00390625
    %v193 = vmul.f32 %v191, %v191
    %v194 = vsub.f32 %v192, %v193
    %v195 = vmax.f32 %v194, 0.0
    %s196 = sld [smem:[#allocation6 + $0x7c]]
    %v197 = vadd.f32 %v195, 1e-05
    %v198 = vrsqrt.pop %v197
    %v199 = vmul.f32 %v198, %v197
    %v200 = vmul.f32 %v199, %v198
    %v201 = vmul.f32 0.5, %v200
    %v202 = vsub.f32 1.5, %v201
    %v203 = vmul.f32 %v198, %v202
    %vm204 = vweird.f32 %v197
    %vm205 = vweird.f32 %v198
    %vm206 = vmor %vm204, %vm205
    %v207 = vsel %vm206, %v198, %v203
    %v208 = vstv %s196
    %v209 = vmul.f32 %v208, %v207
    %s210 = sld [smem:[#allocation6 + $0x81]]
    %v211 = vmul.f32 %v191, %v209
    %v212 = vstv %s210
    %v213 = vsub.f32 %v212, %v211
    %v214 = vmul.f32 %v74, %v209
    %v215 = vadd.f32 %v214, %v213
    %v216 = vmul.f32 %v215, 0.01
    %v217 = vmax.f32 %v215, %v216
    %v218 = vsel %vm167, %v97, 0.0
    %219 = vadd.xlane.f32.xlu0 %v218
    %v220 = vpop.xlane.xlu0 %219
    %v221 = vrot.slane %v220, 4
    %v222 = vadd.f32 %v220, %v221
    %v223 = vrot.slane %v222, 2
    %v224 = vadd.f32 %v222, %v223
    %v225 = vrot.slane %v224, 1
    %v226 = vadd.f32 %v224, %v225
    %s227 = vtos %v226
    %v228 = vstv %s227
    %v229 = vmul.f32 %v97, %v97
    %v230 = vsel %vm167, %v229, 0.0
    %231 = vadd.xlane.f32.xlu0 %v230
    %v232 = vpop.xlane.xlu0 %231
    %v233 = vrot.slane %v232, 4
    %v234 = vadd.f32 %v232, %v233
    %v235 = vrot.slane %v234, 2
    %v236 = vadd.f32 %v234, %v235
    %v237 = vrot.slane %v236, 1
    %v238 = vadd.f32 %v236, %v237
    %s239 = vtos %v238
    %v240 = vstv %s239
    %v241 = vmul.f32 %v228, 0.00390625
    %v242 = vmul.f32 %v240, 0.00390625
    %v243 = vmul.f32 %v241, %v241
    %v244 = vsub.f32 %v242, %v243
    %v245 = vmax.f32 %v244, 0.0
    %s246 = sld [smem:[#allocation6 + $0x7d]]
    %v247 = vadd.f32 %v245, 1e-05
    %v248 = vrsqrt.pop %v247
    %v249 = vmul.f32 %v248, %v247
    %v250 = vmul.f32 %v249, %v248
    %v251 = vmul.f32 0.5, %v250
    %v252 = vsub.f32 1.5, %v251
    %v253 = vmul.f32 %v248, %v252
    %vm254 = vweird.f32 %v247
    %vm255 = vweird.f32 %v248
    %vm256 = vmor %vm254, %vm255
    %v257 = vsel %vm256, %v248, %v253
    %v258 = vstv %s246
    %v259 = vmul.f32 %v258, %v257
    %s260 = sld [smem:[#allocation6 + $0x82]]
    %v261 = vmul.f32 %v241, %v259
    %v262 = vstv %s260
    %v263 = vsub.f32 %v262, %v261
    %v264 = vmul.f32 %v97, %v259
    %v265 = vadd.f32 %v264, %v263
    %v266 = vmul.f32 %v265, 0.01
    %v267 = vmax.f32 %v265, %v266
    %v268 = vsel %vm167, %v120, 0.0
    %269 = vadd.xlane.f32.xlu0 %v268
    %v270 = vpop.xlane.xlu0 %269
    %v271 = vrot.slane %v270, 4
    %v272 = vadd.f32 %v270, %v271
    %v273 = vrot.slane %v272, 2
    %v274 = vadd.f32 %v272, %v273
    %v275 = vrot.slane %v274, 1
    %v276 = vadd.f32 %v274, %v275
    %s277 = vtos %v276
    %v278 = vstv %s277
    %v279 = vmul.f32 %v120, %v120
    %v280 = vsel %vm167, %v279, 0.0
    %281 = vadd.xlane.f32.xlu0 %v280
    %v282 = vpop.xlane.xlu0 %281
    %v283 = vrot.slane %v282, 4
    %v284 = vadd.f32 %v282, %v283
    %v285 = vrot.slane %v284, 2
    %v286 = vadd.f32 %v284, %v285
    %v287 = vrot.slane %v286, 1
    %v288 = vadd.f32 %v286, %v287
    %s289 = vtos %v288
    %v290 = vstv %s289
    %v291 = vmul.f32 %v278, 0.00390625
    %v292 = vmul.f32 %v290, 0.00390625
    %v293 = vmul.f32 %v291, %v291
    %v294 = vsub.f32 %v292, %v293
    %v295 = vmax.f32 %v294, 0.0
    %s296 = sld [smem:[#allocation6 + $0x7e]]
    %v297 = vadd.f32 %v295, 1e-05
    %v298 = vrsqrt.pop %v297
    %v299 = vmul.f32 %v298, %v297
    %v300 = vmul.f32 %v299, %v298
    %v301 = vmul.f32 0.5, %v300
    %v302 = vsub.f32 1.5, %v301
    %v303 = vmul.f32 %v298, %v302
    %vm304 = vweird.f32 %v297
    %vm305 = vweird.f32 %v298
    %vm306 = vmor %vm304, %vm305
    %v307 = vsel %vm306, %v298, %v303
    %v308 = vstv %s296
    %v309 = vmul.f32 %v308, %v307
    %s310 = sld [smem:[#allocation6 + $0x83]]
    %v311 = vmul.f32 %v291, %v309
    %v312 = vstv %s310
    %v313 = vsub.f32 %v312, %v311
    %v314 = vmul.f32 %v120, %v309
    %v315 = vadd.f32 %v314, %v313
    %v316 = vmul.f32 %v315, 0.01
    %v317 = vmax.f32 %v315, %v316
    %v318 = vsel %vm167, %v143, 0.0
    %319 = vadd.xlane.f32.xlu0 %v318
    %v320 = vpop.xlane.xlu0 %319
    %v321 = vrot.slane %v320, 4
    %v322 = vadd.f32 %v320, %v321
    %v323 = vrot.slane %v322, 2
    %v324 = vadd.f32 %v322, %v323
    %v325 = vrot.slane %v324, 1
    %v326 = vadd.f32 %v324, %v325
    %s327 = vtos %v326
    %v328 = vstv %s327
    %v329 = vmul.f32 %v143, %v143
    %v330 = vsel %vm167, %v329, 0.0
    %331 = vadd.xlane.f32.xlu0 %v330
    %v332 = vpop.xlane.xlu0 %331
    %v333 = vrot.slane %v332, 4
    %v334 = vadd.f32 %v332, %v333
    %v335 = vrot.slane %v334, 2
    %v336 = vadd.f32 %v334, %v335
    %v337 = vrot.slane %v336, 1
    %v338 = vadd.f32 %v336, %v337
    %s339 = vtos %v338
    %v340 = vstv %s339
    %v341 = vmul.f32 %v328, 0.00390625
    %v342 = vmul.f32 %v340, 0.00390625
    %v343 = vmul.f32 %v341, %v341
    %v344 = vsub.f32 %v342, %v343
    %v345 = vmax.f32 %v344, 0.0
    %s346 = sld [smem:[#allocation6 + $0x7f]]
    %v347 = vadd.f32 %v345, 1e-05
    %v348 = vrsqrt.pop %v347
    %v349 = vmul.f32 %v348, %v347
    %v350 = vmul.f32 %v349, %v348
    %v351 = vmul.f32 0.5, %v350
    %v352 = vsub.f32 1.5, %v351
    %v353 = vmul.f32 %v348, %v352
    %vm354 = vweird.f32 %v347
    %vm355 = vweird.f32 %v348
    %vm356 = vmor %vm354, %vm355
    %v357 = vsel %vm356, %v348, %v353
    %v358 = vstv %s346
    %v359 = vmul.f32 %v358, %v357
    %s360 = sld [smem:[#allocation6 + $0x84]]
    %v361 = vmul.f32 %v341, %v359
    %v362 = vstv %s360
    %v363 = vsub.f32 %v362, %v361
    %v364 = vmul.f32 %v143, %v359
    %v365 = vadd.f32 %v364, %v363
    %v366 = vmul.f32 %v365, 0.01
    %v367 = vmax.f32 %v365, %v366
    %v368 = vsel %vm167, %v166, 0.0
    %369 = vadd.xlane.f32.xlu0 %v368
    %v370 = vpop.xlane.xlu0 %369
    %v371 = vrot.slane %v370, 4
    %v372 = vadd.f32 %v370, %v371
    %v373 = vrot.slane %v372, 2
    %v374 = vadd.f32 %v372, %v373
    %v375 = vrot.slane %v374, 1
    %v376 = vadd.f32 %v374, %v375
    %s377 = vtos %v376
    %v378 = vstv %s377
    %v379 = vmul.f32 %v166, %v166
    %v380 = vsel %vm167, %v379, 0.0
    %381 = vadd.xlane.f32.xlu0 %v380
    %v382 = vpop.xlane.xlu0 %381
    %v383 = vrot.slane %v382, 4
    %v384 = vadd.f32 %v382, %v383
    %v385 = vrot.slane %v384, 2
    %v386 = vadd.f32 %v384, %v385
    %v387 = vrot.slane %v386, 1
    %v388 = vadd.f32 %v386, %v387
    %s389 = vtos %v388
    %v390 = vstv %s389
    %v391 = vmul.f32 %v378, 0.00390625
    %v392 = vmul.f32 %v390, 0.00390625
    %v393 = vmul.f32 %v391, %v391
    %v394 = vsub.f32 %v392, %v393
    %v395 = vmax.f32 %v394, 0.0
    %s396 = sld [smem:[#allocation6 + $0x80]]
    %v397 = vadd.f32 %v395, 1e-05
    %v398 = vrsqrt.pop %v397
    %v399 = vmul.f32 %v398, %v397
    %v400 = vmul.f32 %v399, %v398
    %v401 = vmul.f32 0.5, %v400
    %v402 = vsub.f32 1.5, %v401
    %v403 = vmul.f32 %v398, %v402
    %vm404 = vweird.f32 %v397
    %vm405 = vweird.f32 %v398
    %vm406 = vmor %vm404, %vm405
    %v407 = vsel %vm406, %v398, %v403
    %v408 = vstv %s396
    %v409 = vmul.f32 %v408, %v407
    %s410 = sld [smem:[#allocation6 + $0x85]]
    %v411 = vmul.f32 %v391, %v409
    %v412 = vstv %s410
    %v413 = vsub.f32 %v412, %v411
    %v414 = vmul.f32 %v166, %v409
    %v415 = vadd.f32 %v414, %v413
    %v416 = vmul.f32 %v415, 0.01
    %v417 = vmax.f32 %v415, %v416
    %s418 = sld [smem:[#allocation6 + $0x1e]]
    %v419 = vstv %s418
    %v420 = vmul.f32 %v419, %v217
    %s421 = sld [smem:[#allocation6 + $0x1f]]
    %v422 = vstv %s421
    %v423 = vmul.f32 %v422, %v267
    %v424 = vadd.f32 %v420, %v423
    %s425 = sld [smem:[#allocation6 + $0x20]]
    %v426 = vstv %s425
    %v427 = vmul.f32 %v426, %v317
    %v428 = vadd.f32 %v424, %v427
    %s429 = sld [smem:[#allocation6 + $0x21]]
    %v430 = vstv %s429
    %v431 = vmul.f32 %v430, %v367
    %v432 = vadd.f32 %v428, %v431
    %s433 = sld [smem:[#allocation6 + $0x22]]
    %v434 = vstv %s433
    %v435 = vmul.f32 %v434, %v417
    %v436 = vadd.f32 %v432, %v435
    %s437 = sld [smem:[#allocation6 + $0x23]]
    %v438 = vstv %s437
    %v439 = vmul.f32 %v438, %v217
    %s440 = sld [smem:[#allocation6 + $0x24]]
    %v441 = vstv %s440
    %v442 = vmul.f32 %v441, %v267
    %v443 = vadd.f32 %v439, %v442
    %s444 = sld [smem:[#allocation6 + $0x25]]
    %v445 = vstv %s444
    %v446 = vmul.f32 %v445, %v317
    %v447 = vadd.f32 %v443, %v446
    %s448 = sld [smem:[#allocation6 + $0x26]]
    %v449 = vstv %s448
    %v450 = vmul.f32 %v449, %v367
    %v451 = vadd.f32 %v447, %v450
    %s452 = sld [smem:[#allocation6 + $0x27]]
    %v453 = vstv %s452
    %v454 = vmul.f32 %v453, %v417
    %v455 = vadd.f32 %v451, %v454
    %s456 = sld [smem:[#allocation6 + $0x28]]
    %v457 = vstv %s456
    %v458 = vmul.f32 %v457, %v217
    %s459 = sld [smem:[#allocation6 + $0x29]]
    %v460 = vstv %s459
    %v461 = vmul.f32 %v460, %v267
    %v462 = vadd.f32 %v458, %v461
    %s463 = sld [smem:[#allocation6 + $0x2a]]
    %v464 = vstv %s463
    %v465 = vmul.f32 %v464, %v317
    %v466 = vadd.f32 %v462, %v465
    %s467 = sld [smem:[#allocation6 + $0x2b]]
    %v468 = vstv %s467
    %v469 = vmul.f32 %v468, %v367
    %v470 = vadd.f32 %v466, %v469
    %s471 = sld [smem:[#allocation6 + $0x2c]]
    %v472 = vstv %s471
    %v473 = vmul.f32 %v472, %v417
    %v474 = vadd.f32 %v470, %v473
    %s475 = sld [smem:[#allocation6 + $0x2d]]
    %v476 = vstv %s475
    %v477 = vmul.f32 %v476, %v217
    %s478 = sld [smem:[#allocation6 + $0x2e]]
    %v479 = vstv %s478
    %v480 = vmul.f32 %v479, %v267
    %v481 = vadd.f32 %v477, %v480
    %s482 = sld [smem:[#allocation6 + $0x2f]]
    %v483 = vstv %s482
    %v484 = vmul.f32 %v483, %v317
    %v485 = vadd.f32 %v481, %v484
    %s486 = sld [smem:[#allocation6 + $0x30]]
    %v487 = vstv %s486
    %v488 = vmul.f32 %v487, %v367
    %v489 = vadd.f32 %v485, %v488
    %s490 = sld [smem:[#allocation6 + $0x31]]
    %v491 = vstv %s490
    %v492 = vmul.f32 %v491, %v417
    %v493 = vadd.f32 %v489, %v492
    %v494 = vsel %vm167, %v436, 0.0
    %495 = vadd.xlane.f32.xlu0 %v494
    %v496 = vpop.xlane.xlu0 %495
    %v497 = vrot.slane %v496, 4
    %v498 = vadd.f32 %v496, %v497
    %v499 = vrot.slane %v498, 2
    %v500 = vadd.f32 %v498, %v499
    %v501 = vrot.slane %v500, 1
    %v502 = vadd.f32 %v500, %v501
    %s503 = vtos %v502
    %v504 = vstv %s503
    %v505 = vmul.f32 %v436, %v436
    %v506 = vsel %vm167, %v505, 0.0
    %507 = vadd.xlane.f32.xlu0 %v506
    %v508 = vpop.xlane.xlu0 %507
    %v509 = vrot.slane %v508, 4
    %v510 = vadd.f32 %v508, %v509
    %v511 = vrot.slane %v510, 2
    %v512 = vadd.f32 %v510, %v511
    %v513 = vrot.slane %v512, 1
    %v514 = vadd.f32 %v512, %v513
    %s515 = vtos %v514
    %v516 = vstv %s515
    %v517 = vmul.f32 %v504, 0.00390625
    %v518 = vmul.f32 %v516, 0.00390625
    %v519 = vmul.f32 %v517, %v517
    %v520 = vsub.f32 %v518, %v519
    %v521 = vmax.f32 %v520, 0.0
    %s522 = sld [smem:[#allocation6 + $0x86]]
    %v523 = vadd.f32 %v521, 1e-05
    %v524 = vrsqrt.pop %v523
    %v525 = vmul.f32 %v524, %v523
    %v526 = vmul.f32 %v525, %v524
    %v527 = vmul.f32 0.5, %v526
    %v528 = vsub.f32 1.5, %v527
    %v529 = vmul.f32 %v524, %v528
    %vm530 = vweird.f32 %v523
    %vm531 = vweird.f32 %v524
    %vm532 = vmor %vm530, %vm531
    %v533 = vsel %vm532, %v524, %v529
    %v534 = vstv %s522
    %v535 = vmul.f32 %v534, %v533
    %s536 = sld [smem:[#allocation6 + $0x8a]]
    %v537 = vmul.f32 %v517, %v535
    %v538 = vstv %s536
    %v539 = vsub.f32 %v538, %v537
    %v540 = vmul.f32 %v436, %v535
    %v541 = vadd.f32 %v540, %v539
    %v542 = vmul.f32 %v541, 0.01
    %v543 = vmax.f32 %v541, %v542
    %v544 = vsel %vm167, %v455, 0.0
    %545 = vadd.xlane.f32.xlu0 %v544
    %v546 = vpop.xlane.xlu0 %545
    %v547 = vrot.slane %v546, 4
    %v548 = vadd.f32 %v546, %v547
    %v549 = vrot.slane %v548, 2
    %v550 = vadd.f32 %v548, %v549
    %v551 = vrot.slane %v550, 1
    %v552 = vadd.f32 %v550, %v551
    %s553 = vtos %v552
    %v554 = vstv %s553
    %v555 = vmul.f32 %v455, %v455
    %v556 = vsel %vm167, %v555, 0.0
    %557 = vadd.xlane.f32.xlu0 %v556
    %v558 = vpop.xlane.xlu0 %557
    %v559 = vrot.slane %v558, 4
    %v560 = vadd.f32 %v558, %v559
    %v561 = vrot.slane %v560, 2
    %v562 = vadd.f32 %v560, %v561
    %v563 = vrot.slane %v562, 1
    %v564 = vadd.f32 %v562, %v563
    %s565 = vtos %v564
    %v566 = vstv %s565
    %v567 = vmul.f32 %v554, 0.00390625
    %v568 = vmul.f32 %v566, 0.00390625
    %v569 = vmul.f32 %v567, %v567
    %v570 = vsub.f32 %v568, %v569
    %v571 = vmax.f32 %v570, 0.0
    %s572 = sld [smem:[#allocation6 + $0x87]]
    %v573 = vadd.f32 %v571, 1e-05
    %v574 = vrsqrt.pop %v573
    %v575 = vmul.f32 %v574, %v573
    %v576 = vmul.f32 %v575, %v574
    %v577 = vmul.f32 0.5, %v576
    %v578 = vsub.f32 1.5, %v577
    %v579 = vmul.f32 %v574, %v578
    %vm580 = vweird.f32 %v573
    %vm581 = vweird.f32 %v574
    %vm582 = vmor %vm580, %vm581
    %v583 = vsel %vm582, %v574, %v579
    %v584 = vstv %s572
    %v585 = vmul.f32 %v584, %v583
    %s586 = sld [smem:[#allocation6 + $0x8b]]
    %v587 = vmul.f32 %v567, %v585
    %v588 = vstv %s586
    %v589 = vsub.f32 %v588, %v587
    %v590 = vmul.f32 %v455, %v585
    %v591 = vadd.f32 %v590, %v589
    %v592 = vmul.f32 %v591, 0.01
    %v593 = vmax.f32 %v591, %v592
    %v594 = vsel %vm167, %v474, 0.0
    %595 = vadd.xlane.f32.xlu0 %v594
    %v596 = vpop.xlane.xlu0 %595
    %v597 = vrot.slane %v596, 4
    %v598 = vadd.f32 %v596, %v597
    %v599 = vrot.slane %v598, 2
    %v600 = vadd.f32 %v598, %v599
    %v601 = vrot.slane %v600, 1
    %v602 = vadd.f32 %v600, %v601
    %s603 = vtos %v602
    %v604 = vstv %s603
    %v605 = vmul.f32 %v474, %v474
    %v606 = vsel %vm167, %v605, 0.0
    %607 = vadd.xlane.f32.xlu0 %v606
    %v608 = vpop.xlane.xlu0 %607
    %v609 = vrot.slane %v608, 4
    %v610 = vadd.f32 %v608, %v609
    %v611 = vrot.slane %v610, 2
    %v612 = vadd.f32 %v610, %v611
    %v613 = vrot.slane %v612, 1
    %v614 = vadd.f32 %v612, %v613
    %s615 = vtos %v614
    %v616 = vstv %s615
    %v617 = vmul.f32 %v604, 0.00390625
    %v618 = vmul.f32 %v616, 0.00390625
    %v619 = vmul.f32 %v617, %v617
    %v620 = vsub.f32 %v618, %v619
    %v621 = vmax.f32 %v620, 0.0
    %s622 = sld [smem:[#allocation6 + $0x88]]
    %v623 = vadd.f32 %v621, 1e-05
    %v624 = vrsqrt.pop %v623
    %v625 = vmul.f32 %v624, %v623
    %v626 = vmul.f32 %v625, %v624
    %v627 = vmul.f32 0.5, %v626
    %v628 = vsub.f32 1.5, %v627
    %v629 = vmul.f32 %v624, %v628
    %vm630 = vweird.f32 %v623
    %vm631 = vweird.f32 %v624
    %vm632 = vmor %vm630, %vm631
    %v633 = vsel %vm632, %v624, %v629
    %v634 = vstv %s622
    %v635 = vmul.f32 %v634, %v633
    %s636 = sld [smem:[#allocation6 + $0x8c]]
    %v637 = vmul.f32 %v617, %v635
    %v638 = vstv %s636
    %v639 = vsub.f32 %v638, %v637
    %v640 = vmul.f32 %v474, %v635
    %v641 = vadd.f32 %v640, %v639
    %v642 = vmul.f32 %v641, 0.01
    %v643 = vmax.f32 %v641, %v642
    %v644 = vsel %vm167, %v493, 0.0
    %645 = vadd.xlane.f32.xlu0 %v644
    %v646 = vpop.xlane.xlu0 %645
    %v647 = vrot.slane %v646, 4
    %v648 = vadd.f32 %v646, %v647
    %v649 = vrot.slane %v648, 2
    %v650 = vadd.f32 %v648, %v649
    %v651 = vrot.slane %v650, 1
    %v652 = vadd.f32 %v650, %v651
    %s653 = vtos %v652
    %v654 = vstv %s653
    %v655 = vmul.f32 %v493, %v493
    %v656 = vsel %vm167, %v655, 0.0
    %657 = vadd.xlane.f32.xlu0 %v656
    %v658 = vpop.xlane.xlu0 %657
    %v659 = vrot.slane %v658, 4
    %v660 = vadd.f32 %v658, %v659
    %v661 = vrot.slane %v660, 2
    %v662 = vadd.f32 %v660, %v661
    %v663 = vrot.slane %v662, 1
    %v664 = vadd.f32 %v662, %v663
    %s665 = vtos %v664
    %v666 = vstv %s665
    %v667 = vmul.f32 %v654, 0.00390625
    %v668 = vmul.f32 %v666, 0.00390625
    %v669 = vmul.f32 %v667, %v667
    %v670 = vsub.f32 %v668, %v669
    %v671 = vmax.f32 %v670, 0.0
    %s672 = sld [smem:[#allocation6 + $0x89]]
    %v673 = vadd.f32 %v671, 1e-05
    %v674 = vrsqrt.pop %v673
    %v675 = vmul.f32 %v674, %v673
    %v676 = vmul.f32 %v675, %v674
    %v677 = vmul.f32 0.5, %v676
    %v678 = vsub.f32 1.5, %v677
    %v679 = vmul.f32 %v674, %v678
    %vm680 = vweird.f32 %v673
    %vm681 = vweird.f32 %v674
    %vm682 = vmor %vm680, %vm681
    %v683 = vsel %vm682, %v674, %v679
    %v684 = vstv %s672
    %v685 = vmul.f32 %v684, %v683
    %s686 = sld [smem:[#allocation6 + $0x8d]]
    %v687 = vmul.f32 %v667, %v685
    %v688 = vstv %s686
    %v689 = vsub.f32 %v688, %v687
    %v690 = vmul.f32 %v493, %v685
    %v691 = vadd.f32 %v690, %v689
    %v692 = vmul.f32 %v691, 0.01
    %v693 = vmax.f32 %v691, %v692
    %s694 = sld [smem:[#allocation6 + $0x32]]
    %v695 = vstv %s694
    %v696 = vmul.f32 %v695, %v543
    %s697 = sld [smem:[#allocation6 + $0x33]]
    %v698 = vstv %s697
    %v699 = vmul.f32 %v698, %v593
    %v700 = vadd.f32 %v696, %v699
    %s701 = sld [smem:[#allocation6 + $0x34]]
    %v702 = vstv %s701
    %v703 = vmul.f32 %v702, %v643
    %v704 = vadd.f32 %v700, %v703
    %s705 = sld [smem:[#allocation6 + $0x35]]
    %v706 = vstv %s705
    %v707 = vmul.f32 %v706, %v693
    %v708 = vadd.f32 %v704, %v707
    %s709 = sld [smem:[#allocation6 + $0x36]]
    %v710 = vstv %s709
    %v711 = vmul.f32 %v710, %v543
    %s712 = sld [smem:[#allocation6 + $0x37]]
    %v713 = vstv %s712
    %v714 = vmul.f32 %v713, %v593
    %v715 = vadd.f32 %v711, %v714
    %s716 = sld [smem:[#allocation6 + $0x38]]
    %v717 = vstv %s716
    %v718 = vmul.f32 %v717, %v643
    %v719 = vadd.f32 %v715, %v718
    %s720 = sld [smem:[#allocation6 + $0x39]]
    %v721 = vstv %s720
    %v722 = vmul.f32 %v721, %v693
    %v723 = vadd.f32 %v719, %v722
    %s724 = sld [smem:[#allocation6 + $0x74]]
    %v725 = vstv %s724
    %v726 = vadd.f32 %v708, %v725
    %s727 = sld [smem:[#allocation6 + $0x75]]
    %v728 = vstv %s727
    %v729 = vadd.f32 %v723, %v728
    %s730 = sld [smem:[#allocation6 + $0x3a]]
    %v731 = vstv %s730
    %v732 = vmul.f32 %v731, %v726
    %s733 = sld [smem:[#allocation6 + $0x3b]]
    %v734 = vstv %s733
    %v735 = vmul.f32 %v734, %v729
    %v736 = vadd.f32 %v732, %v735
    %s737 = sld [smem:[#allocation6 + $0x3c]]
    %v738 = vstv %s737
    %v739 = vmul.f32 %v738, %v726
    %s740 = sld [smem:[#allocation6 + $0x3d]]
    %v741 = vstv %s740
    %v742 = vmul.f32 %v741, %v729
    %v743 = vadd.f32 %v739, %v742
    %s744 = sld [smem:[#allocation6 + $0x3e]]
    %v745 = vstv %s744
    %v746 = vmul.f32 %v745, %v726
    %s747 = sld [smem:[#allocation6 + $0x3f]]
    %v748 = vstv %s747
    %v749 = vmul.f32 %v748, %v729
    %v750 = vadd.f32 %v746, %v749
    %s751 = sld [smem:[#allocation6 + $0x40]]
    %v752 = vstv %s751
    %v753 = vmul.f32 %v752, %v726
    %s754 = sld [smem:[#allocation6 + $0x41]]
    %v755 = vstv %s754
    %v756 = vmul.f32 %v755, %v729
    %v757 = vadd.f32 %v753, %v756
    %v758 = vsel %vm167, %v736, 0.0
    %759 = vadd.xlane.f32.xlu0 %v758
    %v760 = vpop.xlane.xlu0 %759
    %v761 = vrot.slane %v760, 4
    %v762 = vadd.f32 %v760, %v761
    %v763 = vrot.slane %v762, 2
    %v764 = vadd.f32 %v762, %v763
    %v765 = vrot.slane %v764, 1
    %v766 = vadd.f32 %v764, %v765
    %s767 = vtos %v766
    %v768 = vstv %s767
    %v769 = vmul.f32 %v736, %v736
    %v770 = vsel %vm167, %v769, 0.0
    %771 = vadd.xlane.f32.xlu0 %v770
    %v772 = vpop.xlane.xlu0 %771
    %v773 = vrot.slane %v772, 4
    %v774 = vadd.f32 %v772, %v773
    %v775 = vrot.slane %v774, 2
    %v776 = vadd.f32 %v774, %v775
    %v777 = vrot.slane %v776, 1
    %v778 = vadd.f32 %v776, %v777
    %s779 = vtos %v778
    %v780 = vstv %s779
    %v781 = vmul.f32 %v768, 0.00390625
    %v782 = vmul.f32 %v780, 0.00390625
    %v783 = vmul.f32 %v781, %v781
    %v784 = vsub.f32 %v782, %v783
    %v785 = vmax.f32 %v784, 0.0
    %s786 = sld [smem:[#allocation6 + $0x8e]]
    %v787 = vadd.f32 %v785, 1e-05
    %v788 = vrsqrt.pop %v787
    %v789 = vmul.f32 %v788, %v787
    %v790 = vmul.f32 %v789, %v788
    %v791 = vmul.f32 0.5, %v790
    %v792 = vsub.f32 1.5, %v791
    %v793 = vmul.f32 %v788, %v792
    %vm794 = vweird.f32 %v787
    %vm795 = vweird.f32 %v788
    %vm796 = vmor %vm794, %vm795
    %v797 = vsel %vm796, %v788, %v793
    %v798 = vstv %s786
    %v799 = vmul.f32 %v798, %v797
    %s800 = sld [smem:[#allocation6 + $0x92]]
    %v801 = vmul.f32 %v781, %v799
    %v802 = vstv %s800
    %v803 = vsub.f32 %v802, %v801
    %v804 = vmul.f32 %v736, %v799
    %v805 = vadd.f32 %v804, %v803
    %v806 = vmul.f32 %v805, 0.01
    %v807 = vmax.f32 %v805, %v806
    %v808 = vsel %vm167, %v743, 0.0
    %809 = vadd.xlane.f32.xlu0 %v808
    %v810 = vpop.xlane.xlu0 %809
    %v811 = vrot.slane %v810, 4
    %v812 = vadd.f32 %v810, %v811
    %v813 = vrot.slane %v812, 2
    %v814 = vadd.f32 %v812, %v813
    %v815 = vrot.slane %v814, 1
    %v816 = vadd.f32 %v814, %v815
    %s817 = vtos %v816
    %v818 = vstv %s817
    %v819 = vmul.f32 %v743, %v743
    %v820 = vsel %vm167, %v819, 0.0
    %821 = vadd.xlane.f32.xlu0 %v820
    %v822 = vpop.xlane.xlu0 %821
    %v823 = vrot.slane %v822, 4
    %v824 = vadd.f32 %v822, %v823
    %v825 = vrot.slane %v824, 2
    %v826 = vadd.f32 %v824, %v825
    %v827 = vrot.slane %v826, 1
    %v828 = vadd.f32 %v826, %v827
    %s829 = vtos %v828
    %v830 = vstv %s829
    %v831 = vmul.f32 %v818, 0.00390625
    %v832 = vmul.f32 %v830, 0.00390625
    %v833 = vmul.f32 %v831, %v831
    %v834 = vsub.f32 %v832, %v833
    %v835 = vmax.f32 %v834, 0.0
    %s836 = sld [smem:[#allocation6 + $0x8f]]
    %v837 = vadd.f32 %v835, 1e-05
    %v838 = vrsqrt.pop %v837
    %v839 = vmul.f32 %v838, %v837
    %v840 = vmul.f32 %v839, %v838
    %v841 = vmul.f32 0.5, %v840
    %v842 = vsub.f32 1.5, %v841
    %v843 = vmul.f32 %v838, %v842
    %vm844 = vweird.f32 %v837
    %vm845 = vweird.f32 %v838
    %vm846 = vmor %vm844, %vm845
    %v847 = vsel %vm846, %v838, %v843
    %v848 = vstv %s836
    %v849 = vmul.f32 %v848, %v847
    %s850 = sld [smem:[#allocation6 + $0x93]]
    %v851 = vmul.f32 %v831, %v849
    %v852 = vstv %s850
    %v853 = vsub.f32 %v852, %v851
    %v854 = vmul.f32 %v743, %v849
    %v855 = vadd.f32 %v854, %v853
    %v856 = vmul.f32 %v855, 0.01
    %v857 = vmax.f32 %v855, %v856
    %v858 = vsel %vm167, %v750, 0.0
    %859 = vadd.xlane.f32.xlu0 %v858
    %v860 = vpop.xlane.xlu0 %859
    %v861 = vrot.slane %v860, 4
    %v862 = vadd.f32 %v860, %v861
    %v863 = vrot.slane %v862, 2
    %v864 = vadd.f32 %v862, %v863
    %v865 = vrot.slane %v864, 1
    %v866 = vadd.f32 %v864, %v865
    %s867 = vtos %v866
    %v868 = vstv %s867
    %v869 = vmul.f32 %v750, %v750
    %v870 = vsel %vm167, %v869, 0.0
    %871 = vadd.xlane.f32.xlu0 %v870
    %v872 = vpop.xlane.xlu0 %871
    %v873 = vrot.slane %v872, 4
    %v874 = vadd.f32 %v872, %v873
    %v875 = vrot.slane %v874, 2
    %v876 = vadd.f32 %v874, %v875
    %v877 = vrot.slane %v876, 1
    %v878 = vadd.f32 %v876, %v877
    %s879 = vtos %v878
    %v880 = vstv %s879
    %v881 = vmul.f32 %v868, 0.00390625
    %v882 = vmul.f32 %v880, 0.00390625
    %v883 = vmul.f32 %v881, %v881
    %v884 = vsub.f32 %v882, %v883
    %v885 = vmax.f32 %v884, 0.0
    %s886 = sld [smem:[#allocation6 + $0x90]]
    %v887 = vadd.f32 %v885, 1e-05
    %v888 = vrsqrt.pop %v887
    %v889 = vmul.f32 %v888, %v887
    %v890 = vmul.f32 %v889, %v888
    %v891 = vmul.f32 0.5, %v890
    %v892 = vsub.f32 1.5, %v891
    %v893 = vmul.f32 %v888, %v892
    %vm894 = vweird.f32 %v887
    %vm895 = vweird.f32 %v888
    %vm896 = vmor %vm894, %vm895
    %v897 = vsel %vm896, %v888, %v893
    %v898 = vstv %s886
    %v899 = vmul.f32 %v898, %v897
    %s900 = sld [smem:[#allocation6 + $0x94]]
    %v901 = vmul.f32 %v881, %v899
    %v902 = vstv %s900
    %v903 = vsub.f32 %v902, %v901
    %v904 = vmul.f32 %v750, %v899
    %v905 = vadd.f32 %v904, %v903
    %v906 = vmul.f32 %v905, 0.01
    %v907 = vmax.f32 %v905, %v906
    %v908 = vsel %vm167, %v757, 0.0
    %909 = vadd.xlane.f32.xlu0 %v908
    %v910 = vpop.xlane.xlu0 %909
    %v911 = vrot.slane %v910, 4
    %v912 = vadd.f32 %v910, %v911
    %v913 = vrot.slane %v912, 2
    %v914 = vadd.f32 %v912, %v913
    %v915 = vrot.slane %v914, 1
    %v916 = vadd.f32 %v914, %v915
    %s917 = vtos %v916
    %v918 = vstv %s917
    %v919 = vmul.f32 %v757, %v757
    %v920 = vsel %vm167, %v919, 0.0
    %921 = vadd.xlane.f32.xlu0 %v920
    %v922 = vpop.xlane.xlu0 %921
    %v923 = vrot.slane %v922, 4
    %v924 = vadd.f32 %v922, %v923
    %v925 = vrot.slane %v924, 2
    %v926 = vadd.f32 %v924, %v925
    %v927 = vrot.slane %v926, 1
    %v928 = vadd.f32 %v926, %v927
    %s929 = vtos %v928
    %v930 = vstv %s929
    %v931 = vmul.f32 %v918, 0.00390625
    %v932 = vmul.f32 %v930, 0.00390625
    %v933 = vmul.f32 %v931, %v931
    %v934 = vsub.f32 %v932, %v933
    %v935 = vmax.f32 %v934, 0.0
    %s936 = sld [smem:[#allocation6 + $0x91]]
    %v937 = vadd.f32 %v935, 1e-05
    %v938 = vrsqrt.pop %v937
    %v939 = vmul.f32 %v938, %v937
    %v940 = vmul.f32 %v939, %v938
    %v941 = vmul.f32 0.5, %v940
    %v942 = vsub.f32 1.5, %v941
    %v943 = vmul.f32 %v938, %v942
    %vm944 = vweird.f32 %v937
    %vm945 = vweird.f32 %v938
    %vm946 = vmor %vm944, %vm945
    %v947 = vsel %vm946, %v938, %v943
    %v948 = vstv %s936
    %v949 = vmul.f32 %v948, %v947
    %s950 = sld [smem:[#allocation6 + $0x95]]
    %v951 = vmul.f32 %v931, %v949
    %v952 = vstv %s950
    %v953 = vsub.f32 %v952, %v951
    %v954 = vmul.f32 %v757, %v949
    %v955 = vadd.f32 %v954, %v953
    %v956 = vmul.f32 %v955, 0.01
    %v957 = vmax.f32 %v955, %v956
    %s958 = sld [smem:[#allocation6 + $0x42]]
    %v959 = vstv %s958
    %v960 = vmul.f32 %v959, %v807
    %s961 = sld [smem:[#allocation6 + $0x43]]
    %v962 = vstv %s961
    %v963 = vmul.f32 %v962, %v857
    %v964 = vadd.f32 %v960, %v963
    %s965 = sld [smem:[#allocation6 + $0x44]]
    %v966 = vstv %s965
    %v967 = vmul.f32 %v966, %v907
    %v968 = vadd.f32 %v964, %v967
    %s969 = sld [smem:[#allocation6 + $0x45]]
    %v970 = vstv %s969
    %v971 = vmul.f32 %v970, %v957
    %v972 = vadd.f32 %v968, %v971
    %s973 = sld [smem:[#allocation6 + $0x46]]
    %v974 = vstv %s973
    %v975 = vmul.f32 %v974, %v807
    %s976 = sld [smem:[#allocation6 + $0x47]]
    %v977 = vstv %s976
    %v978 = vmul.f32 %v977, %v857
    %v979 = vadd.f32 %v975, %v978
    %s980 = sld [smem:[#allocation6 + $0x48]]
    %v981 = vstv %s980
    %v982 = vmul.f32 %v981, %v907
    %v983 = vadd.f32 %v979, %v982
    %s984 = sld [smem:[#allocation6 + $0x49]]
    %v985 = vstv %s984
    %v986 = vmul.f32 %v985, %v957
    %v987 = vadd.f32 %v983, %v986
    %s988 = sld [smem:[#allocation6 + $0x4a]]
    %v989 = vstv %s988
    %v990 = vmul.f32 %v989, %v807
    %s991 = sld [smem:[#allocation6 + $0x4b]]
    %v992 = vstv %s991
    %v993 = vmul.f32 %v992, %v857
    %v994 = vadd.f32 %v990, %v993
    %s995 = sld [smem:[#allocation6 + $0x4c]]
    %v996 = vstv %s995
    %v997 = vmul.f32 %v996, %v907
    %v998 = vadd.f32 %v994, %v997
    %s999 = sld [smem:[#allocation6 + $0x4d]]
    %v1000 = vstv %s999
    %v1001 = vmul.f32 %v1000, %v957
    %v1002 = vadd.f32 %v998, %v1001
    %s1003 = sld [smem:[#allocation6 + $0x4e]]
    %v1004 = vstv %s1003
    %v1005 = vmul.f32 %v1004, %v807
    %s1006 = sld [smem:[#allocation6 + $0x4f]]
    %v1007 = vstv %s1006
    %v1008 = vmul.f32 %v1007, %v857
    %v1009 = vadd.f32 %v1005, %v1008
    %s1010 = sld [smem:[#allocation6 + $0x50]]
    %v1011 = vstv %s1010
    %v1012 = vmul.f32 %v1011, %v907
    %v1013 = vadd.f32 %v1009, %v1012
    %s1014 = sld [smem:[#allocation6 + $0x51]]
    %v1015 = vstv %s1014
    %v1016 = vmul.f32 %v1015, %v957
    %v1017 = vadd.f32 %v1013, %v1016
    %s1018 = sld [smem:[#allocation6 + $0x52]]
    %v1019 = vstv %s1018
    %v1020 = vmul.f32 %v1019, %v807
    %s1021 = sld [smem:[#allocation6 + $0x53]]
    %v1022 = vstv %s1021
    %v1023 = vmul.f32 %v1022, %v857
    %v1024 = vadd.f32 %v1020, %v1023
    %s1025 = sld [smem:[#allocation6 + $0x54]]
    %v1026 = vstv %s1025
    %v1027 = vmul.f32 %v1026, %v907
    %v1028 = vadd.f32 %v1024, %v1027
    %s1029 = sld [smem:[#allocation6 + $0x55]]
    %v1030 = vstv %s1029
    %v1031 = vmul.f32 %v1030, %v957
    %v1032 = vadd.f32 %v1028, %v1031
    %v1033 = vsel %vm167, %v972, 0.0
    %1034 = vadd.xlane.f32.xlu0 %v1033
    %v1035 = vpop.xlane.xlu0 %1034
    %v1036 = vrot.slane %v1035, 4
    %v1037 = vadd.f32 %v1035, %v1036
    %v1038 = vrot.slane %v1037, 2
    %v1039 = vadd.f32 %v1037, %v1038
    %v1040 = vrot.slane %v1039, 1
    %v1041 = vadd.f32 %v1039, %v1040
    %s1042 = vtos %v1041
    %v1043 = vstv %s1042
    %v1044 = vmul.f32 %v972, %v972
    %v1045 = vsel %vm167, %v1044, 0.0
    %1046 = vadd.xlane.f32.xlu0 %v1045
    %v1047 = vpop.xlane.xlu0 %1046
    %v1048 = vrot.slane %v1047, 4
    %v1049 = vadd.f32 %v1047, %v1048
    %v1050 = vrot.slane %v1049, 2
    %v1051 = vadd.f32 %v1049, %v1050
    %v1052 = vrot.slane %v1051, 1
    %v1053 = vadd.f32 %v1051, %v1052
    %s1054 = vtos %v1053
    %v1055 = vstv %s1054
    %v1056 = vmul.f32 %v1043, 0.00390625
    %v1057 = vmul.f32 %v1055, 0.00390625
    %v1058 = vmul.f32 %v1056, %v1056
    %v1059 = vsub.f32 %v1057, %v1058
    %v1060 = vmax.f32 %v1059, 0.0
    %s1061 = sld [smem:[#allocation6 + $0x96]]
    %v1062 = vadd.f32 %v1060, 1e-05
    %v1063 = vrsqrt.pop %v1062
    %v1064 = vmul.f32 %v1063, %v1062
    %v1065 = vmul.f32 %v1064, %v1063
    %v1066 = vmul.f32 0.5, %v1065
    %v1067 = vsub.f32 1.5, %v1066
    %v1068 = vmul.f32 %v1063, %v1067
    %vm1069 = vweird.f32 %v1062
    %vm1070 = vweird.f32 %v1063
    %vm1071 = vmor %vm1069, %vm1070
    %v1072 = vsel %vm1071, %v1063, %v1068
    %v1073 = vstv %s1061
    %v1074 = vmul.f32 %v1073, %v1072
    %s1075 = sld [smem:[#allocation6 + $0x9b]]
    %v1076 = vmul.f32 %v1056, %v1074
    %v1077 = vstv %s1075
    %v1078 = vsub.f32 %v1077, %v1076
    %v1079 = vmul.f32 %v972, %v1074
    %v1080 = vadd.f32 %v1079, %v1078
    %v1081 = vmul.f32 %v1080, 0.01
    %v1082 = vmax.f32 %v1080, %v1081
    %v1083 = vsel %vm167, %v987, 0.0
    %1084 = vadd.xlane.f32.xlu0 %v1083
    %v1085 = vpop.xlane.xlu0 %1084
    %v1086 = vrot.slane %v1085, 4
    %v1087 = vadd.f32 %v1085, %v1086
    %v1088 = vrot.slane %v1087, 2
    %v1089 = vadd.f32 %v1087, %v1088
    %v1090 = vrot.slane %v1089, 1
    %v1091 = vadd.f32 %v1089, %v1090
    %s1092 = vtos %v1091
    %v1093 = vstv %s1092
    %v1094 = vmul.f32 %v987, %v987
    %v1095 = vsel %vm167, %v1094, 0.0
    %1096 = vadd.xlane.f32.xlu0 %v1095
    %v1097 = vpop.xlane.xlu0 %1096
    %v1098 = vrot.slane %v1097, 4
    %v1099 = vadd.f32 %v1097, %v1098
    %v1100 = vrot.slane %v1099, 2
    %v1101 = vadd.f32 %v1099, %v1100
    %v1102 = vrot.slane %v1101, 1
    %v1103 = vadd.f32 %v1101, %v1102
    %s1104 = vtos %v1103
    %v1105 = vstv %s1104
    %v1106 = vmul.f32 %v1093, 0.00390625
    %v1107 = vmul.f32 %v1105, 0.00390625
    %v1108 = vmul.f32 %v1106, %v1106
    %v1109 = vsub.f32 %v1107, %v1108
    %v1110 = vmax.f32 %v1109, 0.0
    %s1111 = sld [smem:[#allocation6 + $0x97]]
    %v1112 = vadd.f32 %v1110, 1e-05
    %v1113 = vrsqrt.pop %v1112
    %v1114 = vmul.f32 %v1113, %v1112
    %v1115 = vmul.f32 %v1114, %v1113
    %v1116 = vmul.f32 0.5, %v1115
    %v1117 = vsub.f32 1.5, %v1116
    %v1118 = vmul.f32 %v1113, %v1117
    %vm1119 = vweird.f32 %v1112
    %vm1120 = vweird.f32 %v1113
    %vm1121 = vmor %vm1119, %vm1120
    %v1122 = vsel %vm1121, %v1113, %v1118
    %v1123 = vstv %s1111
    %v1124 = vmul.f32 %v1123, %v1122
    %s1125 = sld [smem:[#allocation6 + $0x9c]]
    %v1126 = vmul.f32 %v1106, %v1124
    %v1127 = vstv %s1125
    %v1128 = vsub.f32 %v1127, %v1126
    %v1129 = vmul.f32 %v987, %v1124
    %v1130 = vadd.f32 %v1129, %v1128
    %v1131 = vmul.f32 %v1130, 0.01
    %v1132 = vmax.f32 %v1130, %v1131
    %v1133 = vsel %vm167, %v1002, 0.0
    %1134 = vadd.xlane.f32.xlu0 %v1133
    %v1135 = vpop.xlane.xlu0 %1134
    %v1136 = vrot.slane %v1135, 4
    %v1137 = vadd.f32 %v1135, %v1136
    %v1138 = vrot.slane %v1137, 2
    %v1139 = vadd.f32 %v1137, %v1138
    %v1140 = vrot.slane %v1139, 1
    %v1141 = vadd.f32 %v1139, %v1140
    %s1142 = vtos %v1141
    %v1143 = vstv %s1142
    %v1144 = vmul.f32 %v1002, %v1002
    %v1145 = vsel %vm167, %v1144, 0.0
    %1146 = vadd.xlane.f32.xlu0 %v1145
    %v1147 = vpop.xlane.xlu0 %1146
    %v1148 = vrot.slane %v1147, 4
    %v1149 = vadd.f32 %v1147, %v1148
    %v1150 = vrot.slane %v1149, 2
    %v1151 = vadd.f32 %v1149, %v1150
    %v1152 = vrot.slane %v1151, 1
    %v1153 = vadd.f32 %v1151, %v1152
    %s1154 = vtos %v1153
    %v1155 = vstv %s1154
    %v1156 = vmul.f32 %v1143, 0.00390625
    %v1157 = vmul.f32 %v1155, 0.00390625
    %v1158 = vmul.f32 %v1156, %v1156
    %v1159 = vsub.f32 %v1157, %v1158
    %v1160 = vmax.f32 %v1159, 0.0
    %s1161 = sld [smem:[#allocation6 + $0x98]]
    %v1162 = vadd.f32 %v1160, 1e-05
    %v1163 = vrsqrt.pop %v1162
    %v1164 = vmul.f32 %v1163, %v1162
    %v1165 = vmul.f32 %v1164, %v1163
    %v1166 = vmul.f32 0.5, %v1165
    %v1167 = vsub.f32 1.5, %v1166
    %v1168 = vmul.f32 %v1163, %v1167
    %vm1169 = vweird.f32 %v1162
    %vm1170 = vweird.f32 %v1163
    %vm1171 = vmor %vm1169, %vm1170
    %v1172 = vsel %vm1171, %v1163, %v1168
    %v1173 = vstv %s1161
    %v1174 = vmul.f32 %v1173, %v1172
    %s1175 = sld [smem:[#allocation6 + $0x9d]]
    %v1176 = vmul.f32 %v1156, %v1174
    %v1177 = vstv %s1175
    %v1178 = vsub.f32 %v1177, %v1176
    %v1179 = vmul.f32 %v1002, %v1174
    %v1180 = vadd.f32 %v1179, %v1178
    %v1181 = vmul.f32 %v1180, 0.01
    %v1182 = vmax.f32 %v1180, %v1181
    %v1183 = vsel %vm167, %v1017, 0.0
    %1184 = vadd.xlane.f32.xlu0 %v1183
    %v1185 = vpop.xlane.xlu0 %1184
    %v1186 = vrot.slane %v1185, 4
    %v1187 = vadd.f32 %v1185, %v1186
    %v1188 = vrot.slane %v1187, 2
    %v1189 = vadd.f32 %v1187, %v1188
    %v1190 = vrot.slane %v1189, 1
    %v1191 = vadd.f32 %v1189, %v1190
    %s1192 = vtos %v1191
    %v1193 = vstv %s1192
    %v1194 = vmul.f32 %v1017, %v1017
    %v1195 = vsel %vm167, %v1194, 0.0
    %1196 = vadd.xlane.f32.xlu0 %v1195
    %v1197 = vpop.xlane.xlu0 %1196
    %v1198 = vrot.slane %v1197, 4
    %v1199 = vadd.f32 %v1197, %v1198
    %v1200 = vrot.slane %v1199, 2
    %v1201 = vadd.f32 %v1199, %v1200
    %v1202 = vrot.slane %v1201, 1
    %v1203 = vadd.f32 %v1201, %v1202
    %s1204 = vtos %v1203
    %v1205 = vstv %s1204
    %v1206 = vmul.f32 %v1193, 0.00390625
    %v1207 = vmul.f32 %v1205, 0.00390625
    %v1208 = vmul.f32 %v1206, %v1206
    %v1209 = vsub.f32 %v1207, %v1208
    %v1210 = vmax.f32 %v1209, 0.0
    %s1211 = sld [smem:[#allocation6 + $0x99]]
    %v1212 = vadd.f32 %v1210, 1e-05
    %v1213 = vrsqrt.pop %v1212
    %v1214 = vmul.f32 %v1213, %v1212
    %v1215 = vmul.f32 %v1214, %v1213
    %v1216 = vmul.f32 0.5, %v1215
    %v1217 = vsub.f32 1.5, %v1216
    %v1218 = vmul.f32 %v1213, %v1217
    %vm1219 = vweird.f32 %v1212
    %vm1220 = vweird.f32 %v1213
    %vm1221 = vmor %vm1219, %vm1220
    %v1222 = vsel %vm1221, %v1213, %v1218
    %v1223 = vstv %s1211
    %v1224 = vmul.f32 %v1223, %v1222
    %s1225 = sld [smem:[#allocation6 + $0x9e]]
    %v1226 = vmul.f32 %v1206, %v1224
    %v1227 = vstv %s1225
    %v1228 = vsub.f32 %v1227, %v1226
    %v1229 = vmul.f32 %v1017, %v1224
    %v1230 = vadd.f32 %v1229, %v1228
    %v1231 = vmul.f32 %v1230, 0.01
    %v1232 = vmax.f32 %v1230, %v1231
    %v1233 = vsel %vm167, %v1032, 0.0
    %1234 = vadd.xlane.f32.xlu0 %v1233
    %v1235 = vpop.xlane.xlu0 %1234
    %v1236 = vrot.slane %v1235, 4
    %v1237 = vadd.f32 %v1235, %v1236
    %v1238 = vrot.slane %v1237, 2
    %v1239 = vadd.f32 %v1237, %v1238
    %v1240 = vrot.slane %v1239, 1
    %v1241 = vadd.f32 %v1239, %v1240
    %s1242 = vtos %v1241
    %v1243 = vstv %s1242
    %v1244 = vmul.f32 %v1032, %v1032
    %v1245 = vsel %vm167, %v1244, 0.0
    %1246 = vadd.xlane.f32.xlu0 %v1245
    %v1247 = vpop.xlane.xlu0 %1246
    %v1248 = vrot.slane %v1247, 4
    %v1249 = vadd.f32 %v1247, %v1248
    %v1250 = vrot.slane %v1249, 2
    %v1251 = vadd.f32 %v1249, %v1250
    %v1252 = vrot.slane %v1251, 1
    %v1253 = vadd.f32 %v1251, %v1252
    %s1254 = vtos %v1253
    %v1255 = vstv %s1254
    %v1256 = vmul.f32 %v1243, 0.00390625
    %v1257 = vmul.f32 %v1255, 0.00390625
    %v1258 = vmul.f32 %v1256, %v1256
    %v1259 = vsub.f32 %v1257, %v1258
    %v1260 = vmax.f32 %v1259, 0.0
    %s1261 = sld [smem:[#allocation6 + $0x9a]]
    %v1262 = vadd.f32 %v1260, 1e-05
    %v1263 = vrsqrt.pop %v1262
    %v1264 = vmul.f32 %v1263, %v1262
    %v1265 = vmul.f32 %v1264, %v1263
    %v1266 = vmul.f32 0.5, %v1265
    %v1267 = vsub.f32 1.5, %v1266
    %v1268 = vmul.f32 %v1263, %v1267
    %vm1269 = vweird.f32 %v1262
    %vm1270 = vweird.f32 %v1263
    %vm1271 = vmor %vm1269, %vm1270
    %v1272 = vsel %vm1271, %v1263, %v1268
    %v1273 = vstv %s1261
    %v1274 = vmul.f32 %v1273, %v1272
    %s1275 = sld [smem:[#allocation6 + $0x9f]]
    %v1276 = vmul.f32 %v1256, %v1274
    %v1277 = vstv %s1275
    %v1278 = vsub.f32 %v1277, %v1276
    %v1279 = vmul.f32 %v1032, %v1274
    %v1280 = vadd.f32 %v1279, %v1278
    %v1281 = vmul.f32 %v1280, 0.01
    %v1282 = vmax.f32 %v1280, %v1281
    %s1283 = sld [smem:[#allocation6 + $0x56]]
    %v1284 = vstv %s1283
    %v1285 = vmul.f32 %v1284, %v1082
    %s1286 = sld [smem:[#allocation6 + $0x57]]
    %v1287 = vstv %s1286
    %v1288 = vmul.f32 %v1287, %v1132
    %v1289 = vadd.f32 %v1285, %v1288
    %s1290 = sld [smem:[#allocation6 + $0x58]]
    %v1291 = vstv %s1290
    %v1292 = vmul.f32 %v1291, %v1182
    %v1293 = vadd.f32 %v1289, %v1292
    %s1294 = sld [smem:[#allocation6 + $0x59]]
    %v1295 = vstv %s1294
    %v1296 = vmul.f32 %v1295, %v1232
    %v1297 = vadd.f32 %v1293, %v1296
    %s1298 = sld [smem:[#allocation6 + $0x5a]]
    %v1299 = vstv %s1298
    %v1300 = vmul.f32 %v1299, %v1282
    %v1301 = vadd.f32 %v1297, %v1300
    %s1302 = sld [smem:[#allocation6 + $0x5b]]
    %v1303 = vstv %s1302
    %v1304 = vmul.f32 %v1303, %v1082
    %s1305 = sld [smem:[#allocation6 + $0x5c]]
    %v1306 = vstv %s1305
    %v1307 = vmul.f32 %v1306, %v1132
    %v1308 = vadd.f32 %v1304, %v1307
    %s1309 = sld [smem:[#allocation6 + $0x5d]]
    %v1310 = vstv %s1309
    %v1311 = vmul.f32 %v1310, %v1182
    %v1312 = vadd.f32 %v1308, %v1311
    %s1313 = sld [smem:[#allocation6 + $0x5e]]
    %v1314 = vstv %s1313
    %v1315 = vmul.f32 %v1314, %v1232
    %v1316 = vadd.f32 %v1312, %v1315
    %s1317 = sld [smem:[#allocation6 + $0x5f]]
    %v1318 = vstv %s1317
    %v1319 = vmul.f32 %v1318, %v1282
    %v1320 = vadd.f32 %v1316, %v1319
    %s1321 = sld [smem:[#allocation6 + $0x60]]
    %v1322 = vstv %s1321
    %v1323 = vmul.f32 %v1322, %v1082
    %s1324 = sld [smem:[#allocation6 + $0x61]]
    %v1325 = vstv %s1324
    %v1326 = vmul.f32 %v1325, %v1132
    %v1327 = vadd.f32 %v1323, %v1326
    %s1328 = sld [smem:[#allocation6 + $0x62]]
    %v1329 = vstv %s1328
    %v1330 = vmul.f32 %v1329, %v1182
    %v1331 = vadd.f32 %v1327, %v1330
    %s1332 = sld [smem:[#allocation6 + $0x63]]
    %v1333 = vstv %s1332
    %v1334 = vmul.f32 %v1333, %v1232
    %v1335 = vadd.f32 %v1331, %v1334
    %s1336 = sld [smem:[#allocation6 + $0x64]]
    %v1337 = vstv %s1336
    %v1338 = vmul.f32 %v1337, %v1282
    %v1339 = vadd.f32 %v1335, %v1338
    %s1340 = sld [smem:[#allocation6 + $0x65]]
    %v1341 = vstv %s1340
    %v1342 = vmul.f32 %v1341, %v1082
    %s1343 = sld [smem:[#allocation6 + $0x66]]
    %v1344 = vstv %s1343
    %v1345 = vmul.f32 %v1344, %v1132
    %v1346 = vadd.f32 %v1342, %v1345
    %s1347 = sld [smem:[#allocation6 + $0x67]]
    %v1348 = vstv %s1347
    %v1349 = vmul.f32 %v1348, %v1182
    %v1350 = vadd.f32 %v1346, %v1349
    %s1351 = sld [smem:[#allocation6 + $0x68]]
    %v1352 = vstv %s1351
    %v1353 = vmul.f32 %v1352, %v1232
    %v1354 = vadd.f32 %v1350, %v1353
    %s1355 = sld [smem:[#allocation6 + $0x69]]
    %v1356 = vstv %s1355
    %v1357 = vmul.f32 %v1356, %v1282
    %v1358 = vadd.f32 %v1354, %v1357
    %s1359 = sld [smem:[#allocation6 + $0x6a]]
    %v1360 = vstv %s1359
    %v1361 = vmul.f32 %v1360, %v1082
    %s1362 = sld [smem:[#allocation6 + $0x6b]]
    %v1363 = vstv %s1362
    %v1364 = vmul.f32 %v1363, %v1132
    %v1365 = vadd.f32 %v1361, %v1364
    %s1366 = sld [smem:[#allocation6 + $0x6c]]
    %v1367 = vstv %s1366
    %v1368 = vmul.f32 %v1367, %v1182
    %v1369 = vadd.f32 %v1365, %v1368
    %s1370 = sld [smem:[#allocation6 + $0x6d]]
    %v1371 = vstv %s1370
    %v1372 = vmul.f32 %v1371, %v1232
    %v1373 = vadd.f32 %v1369, %v1372
    %s1374 = sld [smem:[#allocation6 + $0x6e]]
    %v1375 = vstv %s1374
    %v1376 = vmul.f32 %v1375, %v1282
    %v1377 = vadd.f32 %v1373, %v1376
    %s1378 = sld [smem:[#allocation6 + $0x6f]]
    %v1379 = vstv %s1378
    %v1380 = vmul.f32 %v1379, %v1082
    %s1381 = sld [smem:[#allocation6 + $0x70]]
    %v1382 = vstv %s1381
    %v1383 = vmul.f32 %v1382, %v1132
    %v1384 = vadd.f32 %v1380, %v1383
    %s1385 = sld [smem:[#allocation6 + $0x71]]
    %v1386 = vstv %s1385
    %v1387 = vmul.f32 %v1386, %v1182
    %v1388 = vadd.f32 %v1384, %v1387
    %s1389 = sld [smem:[#allocation6 + $0x72]]
    %v1390 = vstv %s1389
    %v1391 = vmul.f32 %v1390, %v1232
    %v1392 = vadd.f32 %v1388, %v1391
    %s1393 = sld [smem:[#allocation6 + $0x73]]
    %v1394 = vstv %s1393
    %v1395 = vmul.f32 %v1394, %v1282
    %v1396 = vadd.f32 %v1392, %v1395
    %s1397 = sld [smem:[#allocation6 + $0x76]]
    %v1398 = vstv %s1397
    %v1399 = vadd.f32 %v1301, %v1398
    %1400 = vst [vmem:[#allocation7] sm:$0x3] %v1399
    %s1401 = sld [smem:[#allocation6 + $0x77]]
    %v1402 = vstv %s1401
    %v1403 = vadd.f32 %v1320, %v1402
    %s1404 = scalar_lea.vmem [#allocation7], 2
    %1405 = vst [vmem:[%s1404] sm:$0x3] %v1403
    %s1406 = sld [smem:[#allocation6 + $0x78]]
    %v1407 = vstv %s1406
    %v1408 = vadd.f32 %v1339, %v1407
    %s1409 = scalar_lea.vmem [#allocation7], 4
    %1410 = vst [vmem:[%s1409] sm:$0x3] %v1408
    %s1411 = sld [smem:[#allocation6 + $0x79]]
    %v1412 = vstv %s1411
    %v1413 = vadd.f32 %v1358, %v1412
    %s1414 = scalar_lea.vmem [#allocation7], 6
    %1415 = vst [vmem:[%s1414] sm:$0x3] %v1413
    %s1416 = sld [smem:[#allocation6 + $0x7a]]
    %v1417 = vstv %s1416
    %v1418 = vadd.f32 %v1377, %v1417
    %s1419 = scalar_lea.vmem [#allocation7], 8
    %1420 = vst [vmem:[%s1419] sm:$0x3] %v1418
    %s1421 = sld [smem:[#allocation6 + $0x7b]]
    %v1422 = vstv %s1421
    %v1423 = vadd.f32 %v1396, %v1422
    %s1424 = scalar_lea.vmem [#allocation7], 10
    %1425 = vst [vmem:[%s1424] sm:$0x3] %v1423
    // Predicated region
    $region18: #{tpu_custom_call.1} parent=1 // pred_check
      _
    $region19: #{tpu_custom_call.1} parent=1 // pred_check_branch
      %1427 = sbr.rel (0) target = $region21
    $region20: #{tpu_custom_call.1} parent=1 // pred_region
      %1429 = vsyncadd [#allocation4], 0
      %s1430 = sshll.u32 [#allocation7], 4
      %s1431 = int_to_ptr.vmem [resolvable:$true] %s1430
      %s1432 = sshll.u32 %s2, 4
      %s1433 = int_to_ptr.hbm [resolvable:$true] %s1432
      %1438 = dma.vmem_to_hbm [thread:$0]  %s1431, 192, %s1433, [#allocation4], 32, 32, 2
    $region21: #{tpu_custom_call.1} parent=1 // pred_fallthru
      _
    // Predicated region
    $region22: #{tpu_custom_call.1} parent=1 // pred_check
      _
    $region23: #{tpu_custom_call.1} parent=1 // pred_check_branch
      %1440 = sbr.rel (0) target = $region25
    $region24: #{tpu_custom_call.1} parent=1 // pred_region
      %1442 = dma.done [#allocation4], 192
    $region25: #{tpu_custom_call.1} parent=1 // pred_fallthru
      _
    %1443 = vsyncpa [#allocation3], 1
    %1444 = vsyncpa [#allocation4], 1
    %1445 = vsyncpa [#allocation5], 1

</llo_original>
